<compile_context>
chip_gen: v7x
topology: tpu7x:2x2x1
jax: 0.10.0
libtpu: 0.0.40
codegen_flags: <defaults>
</compile_context>

<pallas_src>
import jax
import jax.numpy as jnp
from jax import lax
from jax.experimental import pallas as pl
from jax.experimental.pallas import tpu as pltpu

B, S, H, F, V = 2, 8, 32, 64, 100   # batch, seq, hidden, ffn, vocab
LN_EPS = 1e-12
COS_EPS = 1e-8
POOL_EPS = 1e-9


def _layer_norm(x, g, b):
    mu = jnp.mean(x, axis=-1, keepdims=True)
    var = jnp.mean((x - mu) ** 2, axis=-1, keepdims=True)
    return (x - mu) * lax.rsqrt(var + LN_EPS) * g + b


def _gelu(x):
    c = 0.7978845608028654  # sqrt(2/pi)
    return 0.5 * x * (1.0 + jnp.tanh(c * (x + 0.044715 * x * x * x)))


# ----------------------------- Encoder + pooling kernel ---------------------
def encoder_pool_kernel(emb_ref, mask_ref, wqkv_ref, bqkv_ref, wo_ref,
                        w1_ref, b1_ref, w2_ref, vecs_ref, out_ref):
    # One grid step == one sentence's full batch of B samples.
    x = emb_ref[0]               # (B, S, H)   embedding output
    m = mask_ref[0]              # (B, 1, S)   attention mask, 1.0 = attend

    # packed small vectors: rows 0..5 = bo, ln1.g, ln1.b, ffn.b2, ln2.g, ln2.b
    bo = vecs_ref[0:1, :]
    g1 = vecs_ref[1:2, :]
    be1 = vecs_ref[2:3, :]
    b2 = vecs_ref[3:4, :]
    g2 = vecs_ref[4:5, :]
    be2 = vecs_ref[5:6, :]

    # _get_extended_attention_mask: (1 - m) * -10000, broadcast over queries
    ext = (1.0 - m) * -10000.0   # (B, 1, S)

    # Fused QKV projection: one (B*S, H) @ (H, 3H) MXU pass.
    # 1/sqrt(H) is already folded into the Q columns of wqkv/bqkv.
    x2 = x.reshape(B * S, H)
    qkv = jnp.dot(x2, wqkv_ref[...],
                  preferred_element_type=jnp.float32) + bqkv_ref[...]
    q = qkv[:, 0:H].reshape(B, S, H)
    k = qkv[:, H:2 * H].reshape(B, S, H)
    v = qkv[:, 2 * H:3 * H].reshape(B, S, H)

    # single-head self-attention, batched over the B samples of this step
    # TODO(synk): multi-head split is pure reshape glue; single head keeps the
    # MXU hot path identical for this synthetic encoder.
    scores = jnp.einsum('bqh,bkh->bqk', q, k,
                        preferred_element_type=jnp.float32) + ext
    scores = scores - jnp.max(scores, axis=-1, keepdims=True)
    p = jnp.exp(scores)
    probs = p * pl.reciprocal(jnp.sum(p, axis=-1, keepdims=True), approx=True)

    ctx = jnp.einsum('bqk,bkh->bqh', probs, v,
                     preferred_element_type=jnp.float32)
    attn_out = jnp.dot(ctx.reshape(B * S, H), wo_ref[...],
                       preferred_element_type=jnp.float32) + bo

    h1 = _layer_norm(x2 + attn_out, g1, be1)

    ffn = jnp.dot(h1, w1_ref[...],
                  preferred_element_type=jnp.float32) + b1_ref[...]
    ffn = _gelu(ffn)
    ffn = jnp.dot(ffn, w2_ref[...],
                  preferred_element_type=jnp.float32) + b2

    h2 = _layer_norm(h1 + ffn, g2, be2).reshape(B, S, H)

    # mean_pooling: sum_t(mask_t * h2_t) / clamp(sum_t mask_t, min=1e-9)
    summed = jnp.einsum('bos,bsh->boh', m, h2,
                        preferred_element_type=jnp.float32)        # (B, 1, H)
    inv_denom = pl.reciprocal(
        jnp.maximum(jnp.sum(m, axis=-1, keepdims=True), POOL_EPS),
        approx=True)                                               # (B, 1, 1)
    out_ref[0] = (summed * inv_denom).reshape(B, H)


def encoder_pool_pair(emb_pair, mask_pair, params):
    """emb_pair: (2,B,S,H) f32, mask_pair: (2,B,1,S) f32 -> pooled (2,B,H)."""
    inv_sqrt_h = 1.0 / jnp.sqrt(jnp.float32(H))
    wqkv = jnp.concatenate(
        [params['wq'] * inv_sqrt_h, params['wk'], params['wv']], axis=1)
    bqkv = jnp.concatenate(
        [params['bq'] * inv_sqrt_h, params['bk'], params['bv']], axis=1)
    vecs = jnp.concatenate(
        [params['bo'], params['g1'], params['be1'],
         params['b2'], params['g2'], params['be2'],
         jnp.zeros((2, H), jnp.float32)], axis=0)                  # (8, H)

    def full(shape):
        return pl.BlockSpec(shape, lambda i, n=len(shape): (0,) * n)

    in_specs = [
        pl.BlockSpec((1, B, S, H), lambda i: (i, 0, 0, 0)),   # embeddings
        pl.BlockSpec((1, B, 1, S), lambda i: (i, 0, 0, 0)),   # attention mask
        full((H, 3 * H)), full((1, 3 * H)),                   # fused QKV
        full((H, H)),                                         # wo
        full((H, F)), full((1, F)), full((F, H)),             # ffn
        full((8, H)),                                         # packed vectors
    ]
    out = pl.pallas_call(
        encoder_pool_kernel,
        out_shape=jax.ShapeDtypeStruct((2, B, H), jnp.float32),
        grid_spec=pltpu.PrefetchScalarGridSpec(
            num_scalar_prefetch=0, grid=(2,),
            in_specs=in_specs,
            out_specs=pl.BlockSpec((1, B, H), lambda i: (i, 0, 0))),
        compiler_params=pltpu.CompilerParams(
            dimension_semantics=("parallel",)),
    )(emb_pair, mask_pair, wqkv, bqkv, params['wo'],
      params['w1'], params['b1'], params['w2'], vecs)
    return out


# ------------------------------ Glue ---------------------------------------
def init_params(key):
    ks = jax.random.split(key, 8)
    sd = 0.02
    return {
        'tok_emb': jax.random.normal(ks[0], (V, H), jnp.float32) * sd,
        'pos_emb': jax.random.normal(ks[1], (S, H), jnp.float32) * sd,
        'emb_g': jnp.ones((H,), jnp.float32),
        'emb_b': jnp.zeros((H,), jnp.float32),
        'wq': jax.random.normal(ks[2], (H, H), jnp.float32) * sd,
        'bq': jnp.zeros((1, H), jnp.float32),
        'wk': jax.random.normal(ks[3], (H, H), jnp.float32) * sd,
        'bk': jnp.zeros((1, H), jnp.float32),
        'wv': jax.random.normal(ks[4], (H, H), jnp.float32) * sd,
        'bv': jnp.zeros((1, H), jnp.float32),
        'wo': jax.random.normal(ks[5], (H, H), jnp.float32) * sd,
        'bo': jnp.zeros((1, H), jnp.float32),
        'g1': jnp.ones((1, H), jnp.float32),
        'be1': jnp.zeros((1, H), jnp.float32),
        'w1': jax.random.normal(ks[6], (H, F), jnp.float32) * sd,
        'b1': jnp.zeros((1, F), jnp.float32),
        'w2': jax.random.normal(ks[7], (F, H), jnp.float32) * sd,
        'b2': jnp.zeros((1, H), jnp.float32),
        'g2': jnp.ones((1, H), jnp.float32),
        'be2': jnp.zeros((1, H), jnp.float32),
    }


def embed(input_ids, p):
    # "bertoid" embedding: token + position + LayerNorm (gather stays in JAX)
    e = p['tok_emb'][input_ids] + p['pos_emb'][None, :, :]
    return _layer_norm(e, p['emb_g'], p['emb_b'])


def forward_pallas(ids1, mask1, ids2, mask2, labels, p):
    emb_pair = jnp.stack([embed(ids1, p), embed(ids2, p)])          # (2,B,S,H)
    mask_pair = jnp.stack([mask1, mask2]).reshape(2, B, 1, S)       # (2,B,1,S)
    pooled = encoder_pool_pair(emb_pair, mask_pair, p)              # (2,B,H)
    e1, e2 = pooled[0], pooled[1]

    # cosine similarity + MSE epilogue in plain JAX (XLA fuses these few
    # vector ops; a dedicated pallas_call here is pure launch overhead).
    dot = jnp.sum(e1 * e2, axis=1)
    n1 = jnp.maximum(jnp.linalg.norm(e1, axis=1), COS_EPS)
    n2 = jnp.maximum(jnp.linalg.norm(e2, axis=1), COS_EPS)
    sims = dot / (n1 * n2)
    loss = jnp.mean((sims - labels) ** 2)
    return loss, sims, (e1, e2)


# --------------------- pure-JAX reference (for checking) -------------------
def _encoder_pool_ref(emb, mask, p):
    ext = (1.0 - mask)[:, None, :] * -10000.0
    q = emb @ p['wq'] + p['bq']
    k = emb @ p['wk'] + p['bk']
    v = emb @ p['wv'] + p['bv']
    scores = jnp.einsum('bqh,bkh->bqk', q, k) / jnp.sqrt(jnp.float32(H)) + ext
    scores = scores - jnp.max(scores, axis=-1, keepdims=True)
    probs = jnp.exp(scores)
    probs = probs / jnp.sum(probs, axis=-1, keepdims=True)
    ctx = jnp.einsum('bqk,bkh->bqh', probs, v)
    attn_out = ctx @ p['wo'] + p['bo']
    h1 = _layer_norm(emb + attn_out, p['g1'], p['be1'])
    ffn = _gelu(h1 @ p['w1'] + p['b1']) @ p['w2'] + p['b2']
    h2 = _layer_norm(h1 + ffn, p['g2'], p['be2'])
    summed = jnp.einsum('bs,bsh->bh', mask, h2)
    denom = jnp.maximum(jnp.sum(mask, axis=1, keepdims=True), POOL_EPS)
    return summed / denom


def forward_ref(ids1, mask1, ids2, mask2, labels, p):
    e1 = _encoder_pool_ref(embed(ids1, p), mask1, p)
    e2 = _encoder_pool_ref(embed(ids2, p), mask2, p)
    dot = jnp.sum(e1 * e2, axis=1)
    n1 = jnp.maximum(jnp.linalg.norm(e1, axis=1), COS_EPS)
    n2 = jnp.maximum(jnp.linalg.norm(e2, axis=1), COS_EPS)
    sims = dot / (n1 * n2)
    loss = jnp.mean((sims - labels) ** 2)
    return loss, sims, (e1, e2)


if __name__ == "__main__":
    key = jax.random.PRNGKey(0)
    kp, k1, k2, kl = jax.random.split(key, 4)
    params = init_params(kp)

    input_ids_1 = jax.random.randint(k1, (B, S), 0, V)
    input_ids_2 = jax.random.randint(k2, (B, S), 0, V)
    attention_mask_1 = jnp.array(
        [[1, 1, 1, 1, 1, 1, 0, 0],
         [1, 1, 1, 1, 1, 1, 1, 1]], dtype=jnp.float32)
    attention_mask_2 = jnp.array(
        [[1, 1, 1, 1, 1, 1, 1, 0],
         [1, 1, 1, 1, 0, 0, 0, 0]], dtype=jnp.float32)
    labels = jax.random.uniform(kl, (B,), jnp.float32)

    loss, sims, (e1, e2) = forward_pallas(
        input_ids_1, attention_mask_1, input_ids_2, attention_mask_2,
        labels, params)
    jax.block_until_ready((loss, sims, e1, e2))

    loss_r, sims_r, (e1_r, e2_r) = forward_ref(
        input_ids_1, attention_mask_1, input_ids_2, attention_mask_2,
        labels, params)

    # tolerances account for pl.reciprocal(approx=True) in softmax / pooling
    assert jnp.allclose(e1, e1_r, atol=1e-3, rtol=1e-3)
    assert jnp.allclose(e2, e2_r, atol=1e-3, rtol=1e-3)
    assert jnp.allclose(sims, sims_r, atol=1e-3, rtol=1e-3)
    assert jnp.allclose(loss, loss_r, atol=1e-3, rtol=1e-3)

    print("KERNEL_OK")
</pallas_src>

<mosaic_0001>
module attributes {stable_mosaic.version = 11 : i64} {
  func.func @encoder_pool_kernel(%arg0: i32, %arg1: memref<1x2x8x32xf32, #tpu.memory_space<vmem>>, %arg2: memref<1x2x1x8xf32, #tpu.memory_space<vmem>>, %arg3: memref<32x96xf32, #tpu.memory_space<vmem>>, %arg4: memref<1x96xf32, #tpu.memory_space<vmem>>, %arg5: memref<32x32xf32, #tpu.memory_space<vmem>>, %arg6: memref<32x64xf32, #tpu.memory_space<vmem>>, %arg7: memref<1x64xf32, #tpu.memory_space<vmem>>, %arg8: memref<64x32xf32, #tpu.memory_space<vmem>>, %arg9: memref<8x32xf32, #tpu.memory_space<vmem>>, %arg10: memref<1x2x32xf32, #tpu.memory_space<vmem>>) attributes {dimension_semantics = [#tpu.dimension_semantics<parallel>], iteration_bounds = array<i64: 2>, scalar_prefetch = 0 : i64, scratch_operands = 0 : i64, tpu.core_type = #tpu.core_type<tc>, window_params = [{transform_indices = @transform_0, window_bounds = array<i64: 1, 2, 8, 32>}, {transform_indices = @transform_1, window_bounds = array<i64: 1, 2, 1, 8>}, {pipeline_mode = #tpu.pipeline_mode<synchronous>, transform_indices = @transform_2, window_bounds = array<i64: 32, 96>}, {pipeline_mode = #tpu.pipeline_mode<synchronous>, transform_indices = @transform_3, window_bounds = array<i64: 1, 96>}, {pipeline_mode = #tpu.pipeline_mode<synchronous>, transform_indices = @transform_4, window_bounds = array<i64: 32, 32>}, {pipeline_mode = #tpu.pipeline_mode<synchronous>, transform_indices = @transform_5, window_bounds = array<i64: 32, 64>}, {pipeline_mode = #tpu.pipeline_mode<synchronous>, transform_indices = @transform_6, window_bounds = array<i64: 1, 64>}, {pipeline_mode = #tpu.pipeline_mode<synchronous>, transform_indices = @transform_7, window_bounds = array<i64: 64, 32>}, {pipeline_mode = #tpu.pipeline_mode<synchronous>, transform_indices = @transform_8, window_bounds = array<i64: 8, 32>}, {transform_indices = @transform_9, window_bounds = array<i64: 1, 2, 32>}]} {
    %c0 = arith.constant 0 : index
    %c0_0 = arith.constant 0 : index
    %c0_1 = arith.constant 0 : index
    %c0_2 = arith.constant 0 : index
    %0 = vector.load %arg1[%c0, %c0_0, %c0_1, %c0_2] : memref<1x2x8x32xf32, #tpu.memory_space<vmem>>, vector<1x2x8x32xf32>
    %1 = vector.shape_cast %0 : vector<1x2x8x32xf32> to vector<2x8x32xf32>
    %c0_3 = arith.constant 0 : index
    %c0_4 = arith.constant 0 : index
    %c0_5 = arith.constant 0 : index
    %c0_6 = arith.constant 0 : index
    %2 = vector.load %arg2[%c0_3, %c0_4, %c0_5, %c0_6] : memref<1x2x1x8xf32, #tpu.memory_space<vmem>>, vector<1x2x1x8xf32>
    %3 = vector.shape_cast %2 : vector<1x2x1x8xf32> to vector<2x1x8xf32>
    %c0_7 = arith.constant 0 : index
    %c0_8 = arith.constant 0 : index
    %4 = vector.load %arg9[%c0_7, %c0_8] : memref<8x32xf32, #tpu.memory_space<vmem>>, vector<1x32xf32>
    %c1 = arith.constant 1 : index
    %c0_9 = arith.constant 0 : index
    %5 = vector.load %arg9[%c1, %c0_9] : memref<8x32xf32, #tpu.memory_space<vmem>>, vector<1x32xf32>
    %c2 = arith.constant 2 : index
    %c0_10 = arith.constant 0 : index
    %6 = vector.load %arg9[%c2, %c0_10] : memref<8x32xf32, #tpu.memory_space<vmem>>, vector<1x32xf32>
    %c3 = arith.constant 3 : index
    %c0_11 = arith.constant 0 : index
    %7 = vector.load %arg9[%c3, %c0_11] : memref<8x32xf32, #tpu.memory_space<vmem>>, vector<1x32xf32>
    %c4 = arith.constant 4 : index
    %c0_12 = arith.constant 0 : index
    %8 = vector.load %arg9[%c4, %c0_12] : memref<8x32xf32, #tpu.memory_space<vmem>>, vector<1x32xf32>
    %c5 = arith.constant 5 : index
    %c0_13 = arith.constant 0 : index
    %9 = vector.load %arg9[%c5, %c0_13] : memref<8x32xf32, #tpu.memory_space<vmem>>, vector<1x32xf32>
    %cst = arith.constant 1.000000e+00 : f32
    %10 = vector.broadcast %cst : f32 to vector<2x1x8xf32>
    %11 = arith.subf %10, %3 : vector<2x1x8xf32>
    %cst_14 = arith.constant -1.000000e+04 : f32
    %12 = vector.broadcast %cst_14 : f32 to vector<2x1x8xf32>
    %13 = arith.mulf %11, %12 : vector<2x1x8xf32>
    %14 = vector.shape_cast %1 : vector<2x8x32xf32> to vector<16x32xf32>
    %c0_15 = arith.constant 0 : index
    %c0_16 = arith.constant 0 : index
    %15 = vector.load %arg3[%c0_15, %c0_16] : memref<32x96xf32, #tpu.memory_space<vmem>>, vector<32x96xf32>
    %cst_17 = arith.constant dense<0.000000e+00> : vector<16x96xf32>
    %16 = tpu.matmul %14, %15, %cst_17 {dimension_numbers = #tpu.dot_dimension_numbers<[1], [0], [0], [1], [0, 0, 1, 1], [], []>} : vector<16x32xf32>, vector<32x96xf32>, vector<16x96xf32> -> vector<16x96xf32>
    %c0_18 = arith.constant 0 : index
    %c0_19 = arith.constant 0 : index
    %17 = vector.load %arg4[%c0_18, %c0_19] : memref<1x96xf32, #tpu.memory_space<vmem>>, vector<1x96xf32>
    %18 = vector.broadcast %17 : vector<1x96xf32> to vector<16x96xf32>
    %19 = arith.addf %16, %18 : vector<16x96xf32>
    %20 = vector.extract_strided_slice %19 {offsets = [0, 0], sizes = [16, 32], strides = [1, 1]} : vector<16x96xf32> to vector<16x32xf32>
    %21 = vector.shape_cast %20 : vector<16x32xf32> to vector<2x8x32xf32>
    %22 = vector.extract_strided_slice %19 {offsets = [0, 32], sizes = [16, 32], strides = [1, 1]} : vector<16x96xf32> to vector<16x32xf32>
    %23 = vector.shape_cast %22 : vector<16x32xf32> to vector<2x8x32xf32>
    %24 = vector.extract_strided_slice %19 {offsets = [0, 64], sizes = [16, 32], strides = [1, 1]} : vector<16x96xf32> to vector<16x32xf32>
    %25 = vector.shape_cast %24 : vector<16x32xf32> to vector<2x8x32xf32>
    "tpu.trace_start"() <{level = 10 : i32, message = "bqh,bkh->bqk"}> : () -> ()
    %cst_20 = arith.constant dense<0.000000e+00> : vector<2x8x8xf32>
    %26 = tpu.matmul %21, %23, %cst_20 {dimension_numbers = #tpu.dot_dimension_numbers<[2], [2], [1], [1], [0, 0, 0, 1, 1, 1], [0], [0]>} : vector<2x8x32xf32>, vector<2x8x32xf32>, vector<2x8x8xf32> -> vector<2x8x8xf32>
    "tpu.trace_stop"() : () -> ()
    %27 = vector.broadcast %13 : vector<2x1x8xf32> to vector<2x8x8xf32>
    %28 = arith.addf %26, %27 : vector<2x8x8xf32>
    %cst_21 = arith.constant dense<0xFF800000> : vector<2x8xf32>
    %29 = vector.multi_reduction <maximumf>, %28, %cst_21 [2] : vector<2x8x8xf32> to vector<2x8xf32>
    %30 = vector.shape_cast %29 : vector<2x8xf32> to vector<2x8x1xf32>
    %31 = vector.broadcast %30 : vector<2x8x1xf32> to vector<2x8x8xf32>
    %32 = arith.subf %28, %31 : vector<2x8x8xf32>
    %33 = math.exp %32 : vector<2x8x8xf32>
    %cst_22 = arith.constant dense<0.000000e+00> : vector<2x8xf32>
    %34 = vector.multi_reduction <add>, %33, %cst_22 [2] : vector<2x8x8xf32> to vector<2x8xf32>
    %35 = vector.shape_cast %34 : vector<2x8xf32> to vector<2x8x1xf32>
    %36 = tpu.reciprocal %35 {approx = true} : vector<2x8x1xf32> -> vector<2x8x1xf32>
    %37 = vector.broadcast %36 : vector<2x8x1xf32> to vector<2x8x8xf32>
    %38 = arith.mulf %33, %37 : vector<2x8x8xf32>
    "tpu.trace_start"() <{level = 10 : i32, message = "bqk,bkh->bqh"}> : () -> ()
    %cst_23 = arith.constant dense<0.000000e+00> : vector<2x8x32xf32>
    %39 = tpu.matmul %38, %25, %cst_23 {dimension_numbers = #tpu.dot_dimension_numbers<[2], [1], [1], [2], [0, 0, 0, 1, 1, 2], [0], [0]>} : vector<2x8x8xf32>, vector<2x8x32xf32>, vector<2x8x32xf32> -> vector<2x8x32xf32>
    "tpu.trace_stop"() : () -> ()
    %40 = vector.shape_cast %39 : vector<2x8x32xf32> to vector<16x32xf32>
    %c0_24 = arith.constant 0 : index
    %c0_25 = arith.constant 0 : index
    %41 = vector.load %arg5[%c0_24, %c0_25] : memref<32x32xf32, #tpu.memory_space<vmem>>, vector<32x32xf32>
    %cst_26 = arith.constant dense<0.000000e+00> : vector<16x32xf32>
    %42 = tpu.matmul %40, %41, %cst_26 {dimension_numbers = #tpu.dot_dimension_numbers<[1], [0], [0], [1], [0, 0, 1, 1], [], []>} : vector<16x32xf32>, vector<32x32xf32>, vector<16x32xf32> -> vector<16x32xf32>
    %43 = vector.broadcast %4 : vector<1x32xf32> to vector<16x32xf32>
    %44 = arith.addf %42, %43 : vector<16x32xf32>
    %45 = arith.addf %14, %44 : vector<16x32xf32>
    %cst_27 = arith.constant dense<0.000000e+00> : vector<16xf32>
    %46 = vector.multi_reduction <add>, %45, %cst_27 [1] : vector<16x32xf32> to vector<16xf32>
    %47 = vector.shape_cast %46 : vector<16xf32> to vector<16x1xf32>
    %cst_28 = arith.constant 3.200000e+01 : f32
    %48 = vector.broadcast %cst_28 : f32 to vector<16x1xf32>
    %49 = arith.divf %47, %48 : vector<16x1xf32>
    %50 = vector.broadcast %49 : vector<16x1xf32> to vector<16x32xf32>
    %51 = arith.subf %45, %50 : vector<16x32xf32>
    %52 = arith.mulf %51, %51 : vector<16x32xf32>
    %cst_29 = arith.constant dense<0.000000e+00> : vector<16xf32>
    %53 = vector.multi_reduction <add>, %52, %cst_29 [1] : vector<16x32xf32> to vector<16xf32>
    %54 = vector.shape_cast %53 : vector<16xf32> to vector<16x1xf32>
    %cst_30 = arith.constant 3.200000e+01 : f32
    %55 = vector.broadcast %cst_30 : f32 to vector<16x1xf32>
    %56 = arith.divf %54, %55 : vector<16x1xf32>
    %57 = vector.broadcast %49 : vector<16x1xf32> to vector<16x32xf32>
    %58 = arith.subf %45, %57 : vector<16x32xf32>
    %cst_31 = arith.constant 9.99999996E-13 : f32
    %59 = vector.broadcast %cst_31 : f32 to vector<16x1xf32>
    %60 = arith.addf %56, %59 : vector<16x1xf32>
    %61 = math.rsqrt %60 : vector<16x1xf32>
    %62 = vector.broadcast %61 : vector<16x1xf32> to vector<16x32xf32>
    %63 = arith.mulf %58, %62 : vector<16x32xf32>
    %64 = vector.broadcast %5 : vector<1x32xf32> to vector<16x32xf32>
    %65 = arith.mulf %63, %64 : vector<16x32xf32>
    %66 = vector.broadcast %6 : vector<1x32xf32> to vector<16x32xf32>
    %67 = arith.addf %65, %66 : vector<16x32xf32>
    %c0_32 = arith.constant 0 : index
    %c0_33 = arith.constant 0 : index
    %68 = vector.load %arg6[%c0_32, %c0_33] : memref<32x64xf32, #tpu.memory_space<vmem>>, vector<32x64xf32>
    %cst_34 = arith.constant dense<0.000000e+00> : vector<16x64xf32>
    %69 = tpu.matmul %67, %68, %cst_34 {dimension_numbers = #tpu.dot_dimension_numbers<[1], [0], [0], [1], [0, 0, 1, 1], [], []>} : vector<16x32xf32>, vector<32x64xf32>, vector<16x64xf32> -> vector<16x64xf32>
    %c0_35 = arith.constant 0 : index
    %c0_36 = arith.constant 0 : index
    %70 = vector.load %arg7[%c0_35, %c0_36] : memref<1x64xf32, #tpu.memory_space<vmem>>, vector<1x64xf32>
    %71 = vector.broadcast %70 : vector<1x64xf32> to vector<16x64xf32>
    %72 = arith.addf %69, %71 : vector<16x64xf32>
    %cst_37 = arith.constant 5.000000e-01 : f32
    %73 = vector.broadcast %cst_37 : f32 to vector<16x64xf32>
    %74 = arith.mulf %73, %72 : vector<16x64xf32>
    %cst_38 = arith.constant 4.471500e-02 : f32
    %75 = vector.broadcast %cst_38 : f32 to vector<16x64xf32>
    %76 = arith.mulf %75, %72 : vector<16x64xf32>
    %77 = arith.mulf %76, %72 : vector<16x64xf32>
    %78 = arith.mulf %77, %72 : vector<16x64xf32>
    %79 = arith.addf %72, %78 : vector<16x64xf32>
    %cst_39 = arith.constant 0.797884583 : f32
    %80 = vector.broadcast %cst_39 : f32 to vector<16x64xf32>
    %81 = arith.mulf %80, %79 : vector<16x64xf32>
    %82 = math.tanh %81 : vector<16x64xf32>
    %cst_40 = arith.constant 1.000000e+00 : f32
    %83 = vector.broadcast %cst_40 : f32 to vector<16x64xf32>
    %84 = arith.addf %83, %82 : vector<16x64xf32>
    %85 = arith.mulf %74, %84 : vector<16x64xf32>
    %c0_41 = arith.constant 0 : index
    %c0_42 = arith.constant 0 : index
    %86 = vector.load %arg8[%c0_41, %c0_42] : memref<64x32xf32, #tpu.memory_space<vmem>>, vector<64x32xf32>
    %cst_43 = arith.constant dense<0.000000e+00> : vector<16x32xf32>
    %87 = tpu.matmul %85, %86, %cst_43 {dimension_numbers = #tpu.dot_dimension_numbers<[1], [0], [0], [1], [0, 0, 1, 1], [], []>} : vector<16x64xf32>, vector<64x32xf32>, vector<16x32xf32> -> vector<16x32xf32>
    %88 = vector.broadcast %7 : vector<1x32xf32> to vector<16x32xf32>
    %89 = arith.addf %87, %88 : vector<16x32xf32>
    %90 = arith.addf %67, %89 : vector<16x32xf32>
    %cst_44 = arith.constant dense<0.000000e+00> : vector<16xf32>
    %91 = vector.multi_reduction <add>, %90, %cst_44 [1] : vector<16x32xf32> to vector<16xf32>
    %92 = vector.shape_cast %91 : vector<16xf32> to vector<16x1xf32>
    %cst_45 = arith.constant 3.200000e+01 : f32
    %93 = vector.broadcast %cst_45 : f32 to vector<16x1xf32>
    %94 = arith.divf %92, %93 : vector<16x1xf32>
    %95 = vector.broadcast %94 : vector<16x1xf32> to vector<16x32xf32>
    %96 = arith.subf %90, %95 : vector<16x32xf32>
    %97 = arith.mulf %96, %96 : vector<16x32xf32>
    %cst_46 = arith.constant dense<0.000000e+00> : vector<16xf32>
    %98 = vector.multi_reduction <add>, %97, %cst_46 [1] : vector<16x32xf32> to vector<16xf32>
    %99 = vector.shape_cast %98 : vector<16xf32> to vector<16x1xf32>
    %cst_47 = arith.constant 3.200000e+01 : f32
    %100 = vector.broadcast %cst_47 : f32 to vector<16x1xf32>
    %101 = arith.divf %99, %100 : vector<16x1xf32>
    %102 = vector.broadcast %94 : vector<16x1xf32> to vector<16x32xf32>
    %103 = arith.subf %90, %102 : vector<16x32xf32>
    %cst_48 = arith.constant 9.99999996E-13 : f32
    %104 = vector.broadcast %cst_48 : f32 to vector<16x1xf32>
    %105 = arith.addf %101, %104 : vector<16x1xf32>
    %106 = math.rsqrt %105 : vector<16x1xf32>
    %107 = vector.broadcast %106 : vector<16x1xf32> to vector<16x32xf32>
    %108 = arith.mulf %103, %107 : vector<16x32xf32>
    %109 = vector.broadcast %8 : vector<1x32xf32> to vector<16x32xf32>
    %110 = arith.mulf %108, %109 : vector<16x32xf32>
    %111 = vector.broadcast %9 : vector<1x32xf32> to vector<16x32xf32>
    %112 = arith.addf %110, %111 : vector<16x32xf32>
    %113 = vector.shape_cast %112 : vector<16x32xf32> to vector<2x8x32xf32>
    "tpu.trace_start"() <{level = 10 : i32, message = "bos,bsh->boh"}> : () -> ()
    %cst_49 = arith.constant dense<0.000000e+00> : vector<2x1x32xf32>
    %114 = tpu.matmul %3, %113, %cst_49 {dimension_numbers = #tpu.dot_dimension_numbers<[2], [1], [1], [2], [0, 0, 0, 1, 1, 2], [0], [0]>} : vector<2x1x8xf32>, vector<2x8x32xf32>, vector<2x1x32xf32> -> vector<2x1x32xf32>
    "tpu.trace_stop"() : () -> ()
    %cst_50 = arith.constant dense<0.000000e+00> : vector<2x1xf32>
    %115 = vector.multi_reduction <add>, %3, %cst_50 [2] : vector<2x1x8xf32> to vector<2x1xf32>
    %116 = vector.shape_cast %115 : vector<2x1xf32> to vector<2x1x1xf32>
    %cst_51 = arith.constant 9.99999971E-10 : f32
    %117 = vector.broadcast %cst_51 : f32 to vector<2x1x1xf32>
    %118 = arith.maximumf %116, %117 : vector<2x1x1xf32>
    %119 = tpu.reciprocal %118 {approx = true} : vector<2x1x1xf32> -> vector<2x1x1xf32>
    %120 = vector.broadcast %119 : vector<2x1x1xf32> to vector<2x1x32xf32>
    %121 = arith.mulf %114, %120 : vector<2x1x32xf32>
    %122 = vector.shape_cast %121 : vector<2x1x32xf32> to vector<2x32xf32>
    %c0_52 = arith.constant 0 : index
    %c0_53 = arith.constant 0 : index
    %c0_54 = arith.constant 0 : index
    %123 = vector.load %arg10[%c0_52, %c0_53, %c0_54] : memref<1x2x32xf32, #tpu.memory_space<vmem>>, vector<1x2x32xf32>
    %124 = vector.shape_cast %123 : vector<1x2x32xf32> to vector<2x32xf32>
    %125 = vector.shape_cast %122 : vector<2x32xf32> to vector<1x2x32xf32>
    tpu.vector_store %arg10[%c0_52, %c0_53, %c0_54], %125 {strides = array<i32>} : memref<1x2x32xf32, #tpu.memory_space<vmem>>, vector<1x2x32xf32>,
    return
  }
  func.func @transform_0(%arg0: i32) -> (i32, i32, i32, i32) {
    %c0_i32 = arith.constant 0 : i32
    %c0_i32_0 = arith.constant 0 : i32
    %c0_i32_1 = arith.constant 0 : i32
    %c0_i32_2 = arith.constant 0 : i32
    return %arg0, %c0_i32, %c0_i32_0, %c0_i32_1 : i32, i32, i32, i32
  }
  func.func @transform_1(%arg0: i32) -> (i32, i32, i32, i32) {
    %c0_i32 = arith.constant 0 : i32
    %c0_i32_0 = arith.constant 0 : i32
    %c0_i32_1 = arith.constant 0 : i32
    %c0_i32_2 = arith.constant 0 : i32
    return %arg0, %c0_i32, %c0_i32_0, %c0_i32_1 : i32, i32, i32, i32
  }
  func.func @transform_2(%arg0: i32) -> (i32, i32) {
    %c0_i32 = arith.constant 0 : i32
    %c0_i32_0 = arith.constant 0 : i32
    %c0_i32_1 = arith.constant 0 : i32
    return %c0_i32, %c0_i32_0 : i32, i32
  }
  func.func @transform_3(%arg0: i32) -> (i32, i32) {
    %c0_i32 = arith.constant 0 : i32
    %c0_i32_0 = arith.constant 0 : i32
    %c0_i32_1 = arith.constant 0 : i32
    return %c0_i32, %c0_i32_0 : i32, i32
  }
  func.func @transform_4(%arg0: i32) -> (i32, i32) {
    %c0_i32 = arith.constant 0 : i32
    %c0_i32_0 = arith.constant 0 : i32
    %c0_i32_1 = arith.constant 0 : i32
    return %c0_i32, %c0_i32_0 : i32, i32
  }
  func.func @transform_5(%arg0: i32) -> (i32, i32) {
    %c0_i32 = arith.constant 0 : i32
    %c0_i32_0 = arith.constant 0 : i32
    %c0_i32_1 = arith.constant 0 : i32
    return %c0_i32, %c0_i32_0 : i32, i32
  }
  func.func @transform_6(%arg0: i32) -> (i32, i32) {
    %c0_i32 = arith.constant 0 : i32
    %c0_i32_0 = arith.constant 0 : i32
    %c0_i32_1 = arith.constant 0 : i32
    return %c0_i32, %c0_i32_0 : i32, i32
  }
  func.func @transform_7(%arg0: i32) -> (i32, i32) {
    %c0_i32 = arith.constant 0 : i32
    %c0_i32_0 = arith.constant 0 : i32
    %c0_i32_1 = arith.constant 0 : i32
    return %c0_i32, %c0_i32_0 : i32, i32
  }
  func.func @transform_8(%arg0: i32) -> (i32, i32) {
    %c0_i32 = arith.constant 0 : i32
    %c0_i32_0 = arith.constant 0 : i32
    %c0_i32_1 = arith.constant 0 : i32
    return %c0_i32, %c0_i32_0 : i32, i32
  }
  func.func @transform_9(%arg0: i32) -> (i32, i32, i32) {
    %c0_i32 = arith.constant 0 : i32
    %c0_i32_0 = arith.constant 0 : i32
    %c0_i32_1 = arith.constant 0 : i32
    return %arg0, %c0_i32, %c0_i32_0 : i32, i32, i32
  }
}

</mosaic_0001>

<llo_original>
// kernel: tpu_custom_call.1
$region0: #{tpu_custom_call.1}
  #allocation0 [shape = 'u32[]', space=smem, size = 0x4, offset = 0x4, fixed_abs, tag = 'smem constant byte address 0x4 - core index']
  #allocation1 [shape = 'u32[144,128]{1,0:T(1,128)}', space=vmem, size = 0x12000, scoped, tag = 'internal scratch']
  %s0 = inlined_call_operand.vmem [shape: f32[2,2,8,32], index: 0, kind: input, shape index: {}]
  %s1 = inlined_call_operand.hbm [shape: f32[2,2,1,8], index: 1, kind: input, shape index: {}]
  %s2 = inlined_call_operand.vmem [shape: f32[32,96], index: 2, kind: input, shape index: {}]
  %s3 = inlined_call_operand.vmem [shape: f32[1,96], index: 3, kind: input, shape index: {}]
  %s4 = inlined_call_operand.vmem [shape: f32[32,32], index: 4, kind: input, shape index: {}]
  %s5 = inlined_call_operand.hbm [shape: f32[32,64], index: 5, kind: input, shape index: {}]
  %s6 = inlined_call_operand.vmem [shape: f32[1,64], index: 6, kind: input, shape index: {}]
  %s7 = inlined_call_operand.vmem [shape: f32[64,32], index: 7, kind: input, shape index: {}]
  %s8 = inlined_call_operand.vmem [shape: f32[8,32], index: 8, kind: input, shape index: {}]
  %s9 = inlined_call_operand.hbm [shape: f32[2,2,32], index: 9, kind: output, shape index: {}]
  %s10 = sld [smem:[#allocation0]]
  $region77: #{tpu_custom_call.1} parent=0
    _
  %s12 = ssub.s32 1, %s10
  %s13 = scalar_select 0, %s12, %s10
  $region1: #{tpu_custom_call.1} parent=0
    #allocation2 [shape = 'u8[2048]{0}', space=vmem, size = 0x800, scoped, tag = 'input window, operand 1']
    #allocation3 [shape = 's32[2]{0}', space=sflag, size = 0x8, scoped, tag = 'scoped memory for tpu_custom_call.1']
    #allocation4 [shape = 's32[2]{0}', space=sflag, size = 0x8, scoped, tag = 'scoped memory for tpu_custom_call.1']
    #allocation5 [shape = 'u8[16384]{0}', space=vmem, size = 0x4000, scoped, tag = 'input window, operand 5, single buffered']
    #allocation6 [shape = 's32[1]{0}', space=sflag, size = 0x4, scoped, tag = 'scoped memory for tpu_custom_call.1']
    #allocation7 [shape = 'u8[2048]{0}', space=vmem, size = 0x800, scoped, tag = 'output window, operand 0']
    %14 = vsyncpa [#allocation3], 0
    %s15 = scalar_lea.sflag [#allocation3], 1
    %16 = vsyncpa %s15, 0
    %17 = vsyncpa [#allocation6], 0
    %18 = vsyncpa [#allocation4], 0
    %s19 = scalar_lea.sflag [#allocation4], 1
    %20 = vsyncpa %s19, 0
    loop: start=0, step=1, limit=4
    $region2: #{tpu_custom_call.1} parent=1 // loop_pre_header
      _
    $region3: #{tpu_custom_call.1} parent=1 // loop_header
      %s22 = sphi 0, %s26
      %p23 = scmp.ge.s32.totalorder %s22, 4
      %s32 = sphi 0, %s34
      %s35 = sphi 0, %s32
      %s36 = sphi 0, %s35
      %s52 = sphi 0, %s36
      %s58 = sphi 0, %s60
      %s61 = sphi 0, %s58
      %s62 = sphi 0, %s61
      %s78 = sphi 0, %s62
      %s82 = sphi 0, %s82
      %s84 = sphi 0, %s82
      %s85 = sphi 0, %s84
      %s99 = sphi 0, %s85
      %s103 = sphi 0, %s103
      %s105 = sphi 0, %s103
      %s106 = sphi 0, %s105
      %s120 = sphi 0, %s106
      %s124 = sphi 0, %s124
      %s126 = sphi 0, %s124
      %s127 = sphi 0, %s126
      %s141 = sphi 0, %s127
      %s145 = sphi 0, %s145
      %s147 = sphi 0, %s145
      %s148 = sphi 0, %s147
      %s162 = sphi 0, %s148
      %s166 = sphi 0, %s166
      %s168 = sphi 0, %s166
      %s169 = sphi 0, %s168
      %s183 = sphi 0, %s169
      %s187 = sphi 0, %s187
      %s189 = sphi 0, %s187
      %s190 = sphi 0, %s189
      %s204 = sphi 0, %s190
      %s208 = sphi 0, %s208
      %s210 = sphi 0, %s208
      %s211 = sphi 0, %s210
      %s225 = sphi 0, %s211
      %s231 = sphi 0, %s233
      %s234 = sphi 0, %s231
      %s235 = sphi 0, %s234
      %s251 = sphi 0, %s235
    $region4: #{tpu_custom_call.1} parent=1 // loop_header_branch
      %25 = sbr.rel (%p23) target = $region8
    $region5: #{tpu_custom_call.1} parent=1 // loop_body
      %s27 = ssub.s32 %s22, 1
      %s28 = ssub.s32 %s22, 2
      %s29 = sadd.s32 %s22, 1
      %s30 = ssub.s32 %s22, %s29
      %p31 = scmp.eq.s32.totalorder %s30, 0
      %s33 = sadd.s32 %s32, 1
      %s34 = scalar_select %p31, %s32, %s33
      %p37 = pneg %p31
      %p38 = scmp.eq.s32.totalorder %s22, 1
      %p39 = por %p37, %p38
      %p40 = scmp.ne.s32.totalorder %s32, %s35
      %p41 = scmp.eq.s32.totalorder %s22, 0
      %p42 = por %p40, %p41
      %p43 = scmp.ne.s32.totalorder %s32, %s35
      %p44 = scmp.eq.s32.totalorder %s27, 1
      %p45 = por %p43, %p44
      %p46 = scmp.ne.s32.totalorder %s35, %s36
      %p47 = scmp.eq.s32.totalorder %s27, 0
      %p48 = por %p46, %p47
      %p49 = scmp.ne.s32.totalorder %s35, %s36
      %p50 = scmp.eq.s32.totalorder %s28, 1
      %p51 = por %p49, %p50
      %p53 = scmp.ne.s32.totalorder %s36, %s52
      %p54 = scmp.eq.s32.totalorder %s28, 0
      %p55 = por %p53, %p54
      %s56 = ssub.s32 %s22, %s29
      %p57 = scmp.eq.s32.totalorder %s56, 0
      %s59 = sadd.s32 %s58, 1
      %s60 = scalar_select %p57, %s58, %s59
      %p63 = pneg %p57
      %p64 = scmp.eq.s32.totalorder %s22, 1
      %p65 = por %p63, %p64
      %p66 = scmp.ne.s32.totalorder %s58, %s61
      %p67 = scmp.eq.s32.totalorder %s22, 0
      %p68 = por %p66, %p67
      %p69 = scmp.ne.s32.totalorder %s58, %s61
      %p70 = scmp.eq.s32.totalorder %s27, 1
      %p71 = por %p69, %p70
      %p72 = scmp.ne.s32.totalorder %s61, %s62
      %p73 = scmp.eq.s32.totalorder %s27, 0
      %p74 = por %p72, %p73
      %p75 = scmp.ne.s32.totalorder %s61, %s62
      %p76 = scmp.eq.s32.totalorder %s28, 1
      %p77 = por %p75, %p76
      %p79 = scmp.ne.s32.totalorder %s62, %s78
      %p80 = scmp.eq.s32.totalorder %s28, 0
      %p81 = por %p79, %p80
      %s83 = sadd.s32 %s82, 1
      %p86 = scmp.eq.s32.totalorder %s22, 1
      %p87 = scmp.ne.s32.totalorder %s82, %s84
      %p88 = scmp.eq.s32.totalorder %s22, 0
      %p89 = por %p87, %p88
      %p90 = scmp.ne.s32.totalorder %s82, %s84
      %p91 = scmp.eq.s32.totalorder %s27, 1
      %p92 = por %p90, %p91
      %p93 = scmp.ne.s32.totalorder %s84, %s85
      %p94 = scmp.eq.s32.totalorder %s27, 0
      %p95 = por %p93, %p94
      %p96 = scmp.ne.s32.totalorder %s84, %s85
      %p97 = scmp.eq.s32.totalorder %s28, 1
      %p98 = por %p96, %p97
      %p100 = scmp.ne.s32.totalorder %s85, %s99
      %p101 = scmp.eq.s32.totalorder %s28, 0
      %p102 = por %p100, %p101
      %s104 = sadd.s32 %s103, 1
      %p107 = scmp.eq.s32.totalorder %s22, 1
      %p108 = scmp.ne.s32.totalorder %s103, %s105
      %p109 = scmp.eq.s32.totalorder %s22, 0
      %p110 = por %p108, %p109
      %p111 = scmp.ne.s32.totalorder %s103, %s105
      %p112 = scmp.eq.s32.totalorder %s27, 1
      %p113 = por %p111, %p112
      %p114 = scmp.ne.s32.totalorder %s105, %s106
      %p115 = scmp.eq.s32.totalorder %s27, 0
      %p116 = por %p114, %p115
      %p117 = scmp.ne.s32.totalorder %s105, %s106
      %p118 = scmp.eq.s32.totalorder %s28, 1
      %p119 = por %p117, %p118
      %p121 = scmp.ne.s32.totalorder %s106, %s120
      %p122 = scmp.eq.s32.totalorder %s28, 0
      %p123 = por %p121, %p122
      %s125 = sadd.s32 %s124, 1
      %p128 = scmp.eq.s32.totalorder %s22, 1
      %p129 = scmp.ne.s32.totalorder %s124, %s126
      %p130 = scmp.eq.s32.totalorder %s22, 0
      %p131 = por %p129, %p130
      %p132 = scmp.ne.s32.totalorder %s124, %s126
      %p133 = scmp.eq.s32.totalorder %s27, 1
      %p134 = por %p132, %p133
      %p135 = scmp.ne.s32.totalorder %s126, %s127
      %p136 = scmp.eq.s32.totalorder %s27, 0
      %p137 = por %p135, %p136
      %p138 = scmp.ne.s32.totalorder %s126, %s127
      %p139 = scmp.eq.s32.totalorder %s28, 1
      %p140 = por %p138, %p139
      %p142 = scmp.ne.s32.totalorder %s127, %s141
      %p143 = scmp.eq.s32.totalorder %s28, 0
      %p144 = por %p142, %p143
      %s146 = sadd.s32 %s145, 1
      %p149 = scmp.eq.s32.totalorder %s22, 1
      %p150 = scmp.ne.s32.totalorder %s145, %s147
      %p151 = scmp.eq.s32.totalorder %s22, 0
      %p152 = por %p150, %p151
      %p153 = scmp.ne.s32.totalorder %s145, %s147
      %p154 = scmp.eq.s32.totalorder %s27, 1
      %p155 = por %p153, %p154
      %p156 = scmp.ne.s32.totalorder %s147, %s148
      %p157 = scmp.eq.s32.totalorder %s27, 0
      %p158 = por %p156, %p157
      %p159 = scmp.ne.s32.totalorder %s147, %s148
      %p160 = scmp.eq.s32.totalorder %s28, 1
      %p161 = por %p159, %p160
      %p163 = scmp.ne.s32.totalorder %s148, %s162
      %p164 = scmp.eq.s32.totalorder %s28, 0
      %p165 = por %p163, %p164
      %s167 = sadd.s32 %s166, 1
      %p170 = scmp.eq.s32.totalorder %s22, 1
      %p171 = scmp.ne.s32.totalorder %s166, %s168
      %p172 = scmp.eq.s32.totalorder %s22, 0
      %p173 = por %p171, %p172
      %p174 = scmp.ne.s32.totalorder %s166, %s168
      %p175 = scmp.eq.s32.totalorder %s27, 1
      %p176 = por %p174, %p175
      %p177 = scmp.ne.s32.totalorder %s168, %s169
      %p178 = scmp.eq.s32.totalorder %s27, 0
      %p179 = por %p177, %p178
      %p180 = scmp.ne.s32.totalorder %s168, %s169
      %p181 = scmp.eq.s32.totalorder %s28, 1
      %p182 = por %p180, %p181
      %p184 = scmp.ne.s32.totalorder %s169, %s183
      %p185 = scmp.eq.s32.totalorder %s28, 0
      %p186 = por %p184, %p185
      %s188 = sadd.s32 %s187, 1
      %p191 = scmp.eq.s32.totalorder %s22, 1
      %p192 = scmp.ne.s32.totalorder %s187, %s189
      %p193 = scmp.eq.s32.totalorder %s22, 0
      %p194 = por %p192, %p193
      %p195 = scmp.ne.s32.totalorder %s187, %s189
      %p196 = scmp.eq.s32.totalorder %s27, 1
      %p197 = por %p195, %p196
      %p198 = scmp.ne.s32.totalorder %s189, %s190
      %p199 = scmp.eq.s32.totalorder %s27, 0
      %p200 = por %p198, %p199
      %p201 = scmp.ne.s32.totalorder %s189, %s190
      %p202 = scmp.eq.s32.totalorder %s28, 1
      %p203 = por %p201, %p202
      %p205 = scmp.ne.s32.totalorder %s190, %s204
      %p206 = scmp.eq.s32.totalorder %s28, 0
      %p207 = por %p205, %p206
      %s209 = sadd.s32 %s208, 1
      %p212 = scmp.eq.s32.totalorder %s22, 1
      %p213 = scmp.ne.s32.totalorder %s208, %s210
      %p214 = scmp.eq.s32.totalorder %s22, 0
      %p215 = por %p213, %p214
      %p216 = scmp.ne.s32.totalorder %s208, %s210
      %p217 = scmp.eq.s32.totalorder %s27, 1
      %p218 = por %p216, %p217
      %p219 = scmp.ne.s32.totalorder %s210, %s211
      %p220 = scmp.eq.s32.totalorder %s27, 0
      %p221 = por %p219, %p220
      %p222 = scmp.ne.s32.totalorder %s210, %s211
      %p223 = scmp.eq.s32.totalorder %s28, 1
      %p224 = por %p222, %p223
      %p226 = scmp.ne.s32.totalorder %s211, %s225
      %p227 = scmp.eq.s32.totalorder %s28, 0
      %p228 = por %p226, %p227
      %s229 = ssub.s32 %s22, %s29
      %p230 = scmp.eq.s32.totalorder %s229, 0
      %s232 = sadd.s32 %s231, 1
      %s233 = scalar_select %p230, %s231, %s232
      %p236 = pneg %p230
      %p237 = scmp.eq.s32.totalorder %s22, 1
      %p238 = por %p236, %p237
      %p239 = scmp.ne.s32.totalorder %s231, %s234
      %p240 = scmp.eq.s32.totalorder %s22, 0
      %p241 = por %p239, %p240
      %p242 = scmp.ne.s32.totalorder %s231, %s234
      %p243 = scmp.eq.s32.totalorder %s27, 1
      %p244 = por %p242, %p243
      %p245 = scmp.ne.s32.totalorder %s234, %s235
      %p246 = scmp.eq.s32.totalorder %s27, 0
      %p247 = por %p245, %p246
      %p248 = scmp.ne.s32.totalorder %s234, %s235
      %p249 = scmp.eq.s32.totalorder %s28, 1
      %p250 = por %p248, %p249
      %p252 = scmp.ne.s32.totalorder %s235, %s251
      %p253 = scmp.eq.s32.totalorder %s28, 0
      %p254 = por %p252, %p253
      %p255 = scmp.le.s32.totalorder 1, %s22
      %p256 = scmp.lt.s32.totalorder %s22, 3
      %p257 = pnand %p255, %p256
      %p258 = pneg %p257
      // Predicated region
      $region9: #{tpu_custom_call.1} parent=5 // pred_check
        _
      $region10: #{tpu_custom_call.1} parent=5 // pred_check_branch
        %260 = sbr.rel (%p257) target = $region12
      $region11: #{tpu_custom_call.1} parent=5 // pred_region
        %s261 = ssub.s32 %s22, 1
        // Predicated region
        $region13: #{tpu_custom_call.1} parent=11 // pred_check
          %p262 = pneg %p95
        $region14: #{tpu_custom_call.1} parent=11 // pred_check_branch
          %264 = sbr.rel (%p262) target = $region16
        $region15: #{tpu_custom_call.1} parent=11 // pred_region
          _
        $region16: #{tpu_custom_call.1} parent=11 // pred_fallthru
          _
        // Predicated region
        $region17: #{tpu_custom_call.1} parent=11 // pred_check
          %p265 = pneg %p116
        $region18: #{tpu_custom_call.1} parent=11 // pred_check_branch
          %267 = sbr.rel (%p265) target = $region20
        $region19: #{tpu_custom_call.1} parent=11 // pred_region
          _
        $region20: #{tpu_custom_call.1} parent=11 // pred_fallthru
          _
        // Predicated region
        $region21: #{tpu_custom_call.1} parent=11 // pred_check
          %p268 = pneg %p137
        $region22: #{tpu_custom_call.1} parent=11 // pred_check_branch
          %270 = sbr.rel (%p268) target = $region24
        $region23: #{tpu_custom_call.1} parent=11 // pred_region
          _
        $region24: #{tpu_custom_call.1} parent=11 // pred_fallthru
          _
        // Predicated region
        $region25: #{tpu_custom_call.1} parent=11 // pred_check
          %p271 = pneg %p158
        $region26: #{tpu_custom_call.1} parent=11 // pred_check_branch
          %273 = sbr.rel (%p271) target = $region28
        $region27: #{tpu_custom_call.1} parent=11 // pred_region
          %s275 = ssub.s32 512, 512
          %276 = vsyncadd [#allocation6], %s275
          %s277 = sshll.u32 [#allocation5], 4
          %s278 = int_to_ptr.vmem [resolvable:$true] %s277
          %283 = dma.hbm_to_vmem [thread:$0]  %s5, 512, %s278, [#allocation6], 128, 128, 8
        $region28: #{tpu_custom_call.1} parent=11 // pred_fallthru
          _
        // Predicated region
        $region29: #{tpu_custom_call.1} parent=11 // pred_check
          %p284 = pneg %p179
        $region30: #{tpu_custom_call.1} parent=11 // pred_check_branch
          %286 = sbr.rel (%p284) target = $region32
        $region31: #{tpu_custom_call.1} parent=11 // pred_region
          _
        $region32: #{tpu_custom_call.1} parent=11 // pred_fallthru
          _
        // Predicated region
        $region33: #{tpu_custom_call.1} parent=11 // pred_check
          %p287 = pneg %p200
        $region34: #{tpu_custom_call.1} parent=11 // pred_check_branch
          %289 = sbr.rel (%p287) target = $region36
        $region35: #{tpu_custom_call.1} parent=11 // pred_region
          _
        $region36: #{tpu_custom_call.1} parent=11 // pred_fallthru
          _
        // Predicated region
        $region37: #{tpu_custom_call.1} parent=11 // pred_check
          %p290 = pneg %p221
        $region38: #{tpu_custom_call.1} parent=11 // pred_check_branch
          %292 = sbr.rel (%p290) target = $region40
        $region39: #{tpu_custom_call.1} parent=11 // pred_region
          _
        $region40: #{tpu_custom_call.1} parent=11 // pred_fallthru
          _
      $region12: #{tpu_custom_call.1} parent=5 // pred_fallthru
        _
      %p293 = scmp.lt.s32.totalorder %s22, 2
      // Predicated region
      $region41: #{tpu_custom_call.1} parent=5 // pred_check
        %p294 = pneg %p293
      $region42: #{tpu_custom_call.1} parent=5 // pred_check_branch
        %296 = sbr.rel (%p294) target = $region44
      $region43: #{tpu_custom_call.1} parent=5 // pred_region
        // Predicated region
        $region45: #{tpu_custom_call.1} parent=43 // pred_check
          %p297 = pneg %p42
        $region46: #{tpu_custom_call.1} parent=43 // pred_check_branch
          %299 = sbr.rel (%p297) target = $region48
        $region47: #{tpu_custom_call.1} parent=43 // pred_region
          %p300 = scmp.lt.s32.totalorder %s22, 1
          %s301 = scalar_select %p300, %s22, 1
          %s302 = smul.addr %s301, 2
          %s303 = smul.addr %s302, 8
          %s304 = scalar_lea.vmem %s0, %s303
        $region48: #{tpu_custom_call.1} parent=43 // pred_fallthru
          _
        // Predicated region
        $region49: #{tpu_custom_call.1} parent=43 // pred_check
          %p305 = pneg %p68
        $region50: #{tpu_custom_call.1} parent=43 // pred_check_branch
          %307 = sbr.rel (%p305) target = $region52
        $region51: #{tpu_custom_call.1} parent=43 // pred_region
          %s308 = sand.u32 %s58, 1
          %s309 = scalar_lea.sflag [#allocation3], %s308
          %s310 = sand.u32 %s58, 1
          %s311 = smul.addr %s310, 2
          %s312 = scalar_lea.vmem [#allocation2], %s311
          %s314 = ssub.s32 32, 32
          %315 = vsyncadd %s309, %s314
          %s316 = smul.addr %s22, 2
          %s317 = smul.addr %s316, 16
          %s318 = scalar_lea.hbm %s1, %s317
          %s319 = sshll.u32 %s312, 4
          %s320 = int_to_ptr.vmem [resolvable:$true] %s319
          %325 = dma.hbm_to_vmem [thread:$0]  %s318, 32, %s320, %s309, 16, 16, 1
        $region52: #{tpu_custom_call.1} parent=43 // pred_fallthru
          _
      $region44: #{tpu_custom_call.1} parent=5 // pred_fallthru
        _
      %p326 = scmp.le.s32.totalorder 1, %s22
      %p327 = scmp.lt.s32.totalorder %s22, 3
      %p328 = pnand %p326, %p327
      %p329 = pneg %p328
      // Predicated region
      $region53: #{tpu_custom_call.1} parent=5 // pred_check
        _
      $region54: #{tpu_custom_call.1} parent=5 // pred_check_branch
        %331 = sbr.rel (%p328) target = $region56
      $region55: #{tpu_custom_call.1} parent=5 // pred_region
        %s332 = ssub.s32 %s22, 1
        %s333 = sand.u32 %s61, 1
        %s334 = scalar_lea.sflag [#allocation3], %s333
        %s335 = sand.u32 %s61, 1
        %s336 = smul.addr %s335, 2
        %s337 = scalar_lea.vmem [#allocation2], %s336
        // Predicated region
        $region57: #{tpu_custom_call.1} parent=55 // pred_check
          %p338 = pneg %p74
        $region58: #{tpu_custom_call.1} parent=55 // pred_check_branch
          %340 = sbr.rel (%p338) target = $region60
        $region59: #{tpu_custom_call.1} parent=55 // pred_region
          %341 = dma.done %s334, 32
        $region60: #{tpu_custom_call.1} parent=55 // pred_fallthru
          _
        // Predicated region
        $region61: #{tpu_custom_call.1} parent=55 // pred_check
          %p342 = pneg %p158
        $region62: #{tpu_custom_call.1} parent=55 // pred_check_branch
          %344 = sbr.rel (%p342) target = $region64
        $region63: #{tpu_custom_call.1} parent=55 // pred_region
          %345 = dma.done [#allocation6], 512
        $region64: #{tpu_custom_call.1} parent=55 // pred_fallthru
          _
        %p346 = scmp.lt.s32.totalorder %s27, 1
        %s347 = scalar_select %p346, %s27, 1
        %s348 = smul.addr %s347, 2
        %s349 = smul.addr %s348, 8
        %s350 = scalar_lea.vmem %s0, %s349
        %p351 = pneg %p48
        %p352 = pneg %p45
        %s353 = sand.u32 %s61, 1
        %s354 = scalar_lea.sflag [#allocation3], %s353
        %s355 = sand.u32 %s61, 1
        %s356 = smul.addr %s355, 2
        %s357 = scalar_lea.vmem [#allocation2], %s356
        %p358 = pneg %p74
        %p359 = pneg %p71
        %p360 = pneg %p95
        %p361 = pneg %p92
        %p362 = pneg %p116
        %p363 = pneg %p113
        %p364 = pneg %p137
        %p365 = pneg %p134
        %p366 = pneg %p158
        %p367 = pneg %p155
        %p368 = pneg %p179
        %p369 = pneg %p176
        %p370 = pneg %p200
        %p371 = pneg %p197
        %p372 = pneg %p221
        %p373 = pneg %p218
        %p374 = pneg %p247
        %p375 = pneg %p244
        %s376 = sand.u32 %s234, 1
        %s377 = scalar_lea.sflag [#allocation4], %s376
        %s378 = sand.u32 %s234, 1
        %s379 = smul.addr %s378, 2
        %s380 = scalar_lea.vmem [#allocation7], %s379
        %p381 = scmp.lt.s32.totalorder %s27, 1
        %s382 = scalar_select %p381, %s27, 1
        %s383 = smul.addr %s382, 2
        %s384 = smul.addr %s383, 8
        %s385 = scalar_lea.vmem %s0, %s384
        %v386 = vld [vmem:[%s385] sm:$0xff]
        %v387 = vld [vmem:[%s385 + $0x8] sm:$0xff]
        %v388 = vld [vmem:[%s337] sm:$0x1]
        %v389 = vld [vmem:[%s337 + $0x1] sm:$0x1]
        %v390 = vld [vmem:[%s8] sm:$0x1]
        %v391 = vld [vmem:[%s8 + $0x1] sm:$0x1]
        %v392 = vld [vmem:[%s8 + $0x2] sm:$0x1]
        %v393 = vld [vmem:[%s8 + $0x3] sm:$0x1]
        %v394 = vld [vmem:[%s8 + $0x4] sm:$0x1]
        %v395 = vld [vmem:[%s8 + $0x5] sm:$0x1]
        %v396 = vsub.f32 1.0, %v388
        %v397 = vsub.f32 1.0, %v389
        %v398 = vmul.f32 %v396, -10000.0
        %v399 = vmul.f32 %v397, -10000.0
        %v400 = vld [vmem:[%s2] sm:$0xff]
        %v401 = vld [vmem:[%s2 + $0x8] sm:$0xff]
        %v402 = vld [vmem:[%s2 + $0x10] sm:$0xff]
        %v403 = vld [vmem:[%s2 + $0x18] sm:$0xff]
        %v404 = vld [vmem:[%s3] sm:$0x1]
        %v406 = vlaneseq
        %v407 = vshrl.u32 %v406, 7
        %v408 = vsub.s32 0, %v407
        %v409 = vrot.slane %v404, %v408
        %vm411 = vcmask 261120
        %v413 = vsel %vm411, %v386, 0
        %v416 = vsel %vm411, %v387, 0
        %418 = vmatprep.subr.mxu0 0.0
        %419 = vmatpush1.msra.mxu0 %v400
        %420 = vmatprep.subr.mxu0 0.0
        %421 = vmatpush1.msra.mxu0 %v401
        %422 = vmatprep.subr.mxu0 0.0
        %423 = vmatpush1.msra.mxu0 %v402
        %424 = vmatprep.subr.mxu0 0.0
        %425 = vmatpush1.msra.mxu0 %v403
        %426 = vmatprep.subr.mxu0 0.0
        %427 = vmatpush1.msra.mxu0 0.0
        %428 = vmatprep.subr.mxu0 0.0
        %429 = vmatpush1.msra.mxu0 0.0
        %430 = vmatprep.subr.mxu0 0.0
        %431 = vmatpush1.msra.mxu0 0.0
        %432 = vmatprep.subr.mxu0 0.0
        %433 = vmatpush1.msra.mxu0 0.0
        %434 = vmatprep.subr.mxu0 0.0
        %435 = vmatpush1.msra.mxu0 0.0
        %436 = vmatprep.subr.mxu0 0.0
        %437 = vmatpush1.msra.mxu0 0.0
        %438 = vmatprep.subr.mxu0 0.0
        %439 = vmatpush1.msra.mxu0 0.0
        %440 = vmatprep.subr.mxu0 0.0
        %441 = vmatpush1.msra.mxu0 0.0
        %442 = vmatprep.subr.mxu0 0.0
        %443 = vmatpush1.msra.mxu0 0.0
        %444 = vmatprep.subr.mxu0 0.0
        %445 = vmatpush1.msra.mxu0 0.0
        %446 = vmatprep.subr.mxu0 0.0
        %447 = vmatpush1.msra.mxu0 0.0
        %448 = vmatprep.subr.mxu0 0.0
        %449 = vmatpush1.msra.mxu0 0.0
        %450 = vmatprep.subr.mxu0 0.0
        %451 = vmatpush1.msra.mxu0 0.0
        %452 = vmatprep.subr.mxu0 0.0
        %453 = vmatpush1.msra.mxu0 0.0
        %454 = vmatprep.subr.mxu0 0.0
        %455 = vmatpush1.msra.mxu0 0.0
        %456 = vmatprep.subr.mxu0 0.0
        %457 = vmatpush1.msra.mxu0 0.0
        %458 = vmatprep.subr.mxu0 0.0
        %459 = vmatpush1.msra.mxu0 0.0
        %460 = vmatprep.subr.mxu0 0.0
        %461 = vmatpush1.msra.mxu0 0.0
        %462 = vmatprep.subr.mxu0 0.0
        %463 = vmatpush1.msra.mxu0 0.0
        %464 = vmatprep.subr.mxu0 0.0
        %465 = vmatpush1.msra.mxu0 0.0
        %466 = vmatprep.subr.mxu0 0.0
        %467 = vmatpush1.msra.mxu0 0.0
        %468 = vmatprep.subr.mxu0 0.0
        %469 = vmatpush1.msra.mxu0 0.0
        %470 = vmatprep.subr.mxu0 0.0
        %471 = vmatpush1.msra.mxu0 0.0
        %472 = vmatprep.subr.mxu0 0.0
        %473 = vmatpush1.msra.mxu0 0.0
        %474 = vmatprep.subr.mxu0 0.0
        %475 = vmatpush1.msra.mxu0 0.0
        %476 = vmatprep.subr.mxu0 0.0
        %477 = vmatpush1.msra.mxu0 0.0
        %478 = vmatprep.subr.mxu0 0.0
        %479 = vmatpush1.msra.mxu0 0.0
        %480 = vmatprep.subr.mxu0 0.0
        %481 = vmatpush1.msra.mxu0 0.0
        %482 = vmatprep.mubr.f32.mxu0 0.0
        %483 = vmatmul.mubr.f32.gmra.mrb[0].mxu0 %v413
        %v484 = vpop.f32.mrb[0].mxu0
        %v485 = vadd.f32 %v409, %v484
        %v486 = vpop.f32.mrb[0].mxu0
        %487 = vmatprep.mubr.f32.mxu0 0.0
        %488 = vmatmul.mubr.f32.gmra.mrb[0].mxu0 %v416
        %v489 = vpop.f32.mrb[0].mxu0
        %v490 = vadd.f32 %v409, %v489
        %v491 = vpop.f32.mrb[0].mxu0
        %492 = vdwg.mxu0
        %v495 = vlaneseq
        %v496 = vshrl.u32 %v495, 7
        %v497 = vsub.s32 0, %v496
        %v498 = vrot.slane %v398, %v497
        %v499 = vlaneseq
        %v500 = vshrl.u32 %v499, 7
        %v501 = vsub.s32 0, %v500
        %v502 = vrot.slane %v399, %v501
        %506 = vrot.lane.b32.xlu0 %v485, 96
        %v507 = vpop.permute.xlu0 %506
        %v508 = vsel %vm411, %v485, 0
        %v510 = vsel %vm411, %v507, 0
        %512 = vmatprep.subr.mxu0 0.0
        %513 = vmatpush1.xpose.msra.mxu0 %v510
        %514 = vmatprep.subr.mxu0 0.0
        %515 = vmatpush1.xpose.msra.mxu0 0.0
        %516 = vmatprep.subr.mxu0 0.0
        %517 = vmatpush1.xpose.msra.mxu0 0.0
        %518 = vmatprep.subr.mxu0 0.0
        %519 = vmatpush1.xpose.msra.mxu0 0.0
        %520 = vmatprep.subr.mxu0 0.0
        %521 = vmatpush1.xpose.msra.mxu0 0.0
        %522 = vmatprep.subr.mxu0 0.0
        %523 = vmatpush1.xpose.msra.mxu0 0.0
        %524 = vmatprep.subr.mxu0 0.0
        %525 = vmatpush1.xpose.msra.mxu0 0.0
        %526 = vmatprep.subr.mxu0 0.0
        %527 = vmatpush1.xpose.msra.mxu0 0.0
        %528 = vmatprep.subr.mxu0 0.0
        %529 = vmatpush1.xpose.msra.mxu0 0.0
        %530 = vmatprep.subr.mxu0 0.0
        %531 = vmatpush1.xpose.msra.mxu0 0.0
        %532 = vmatprep.subr.mxu0 0.0
        %533 = vmatpush1.xpose.msra.mxu0 0.0
        %534 = vmatprep.subr.mxu0 0.0
        %535 = vmatpush1.xpose.msra.mxu0 0.0
        %536 = vmatprep.subr.mxu0 0.0
        %537 = vmatpush1.xpose.msra.mxu0 0.0
        %538 = vmatprep.subr.mxu0 0.0
        %539 = vmatpush1.xpose.msra.mxu0 0.0
        %540 = vmatprep.subr.mxu0 0.0
        %541 = vmatpush1.xpose.msra.mxu0 0.0
        %542 = vmatprep.subr.mxu0 0.0
        %543 = vmatpush1.xpose.msra.mxu0 0.0
        %544 = vmatprep.subr.mxu0 0.0
        %545 = vmatpush1.xpose.msra.mxu0 0.0
        %546 = vmatprep.subr.mxu0 0.0
        %547 = vmatpush1.xpose.msra.mxu0 0.0
        %548 = vmatprep.subr.mxu0 0.0
        %549 = vmatpush1.xpose.msra.mxu0 0.0
        %550 = vmatprep.subr.mxu0 0.0
        %551 = vmatpush1.xpose.msra.mxu0 0.0
        %552 = vmatprep.subr.mxu0 0.0
        %553 = vmatpush1.xpose.msra.mxu0 0.0
        %554 = vmatprep.subr.mxu0 0.0
        %555 = vmatpush1.xpose.msra.mxu0 0.0
        %556 = vmatprep.subr.mxu0 0.0
        %557 = vmatpush1.xpose.msra.mxu0 0.0
        %558 = vmatprep.subr.mxu0 0.0
        %559 = vmatpush1.xpose.msra.mxu0 0.0
        %560 = vmatprep.subr.mxu0 0.0
        %561 = vmatpush1.xpose.msra.mxu0 0.0
        %562 = vmatprep.subr.mxu0 0.0
        %563 = vmatpush1.xpose.msra.mxu0 0.0
        %564 = vmatprep.subr.mxu0 0.0
        %565 = vmatpush1.xpose.msra.mxu0 0.0
        %566 = vmatprep.subr.mxu0 0.0
        %567 = vmatpush1.xpose.msra.mxu0 0.0
        %568 = vmatprep.subr.mxu0 0.0
        %569 = vmatpush1.xpose.msra.mxu0 0.0
        %570 = vmatprep.subr.mxu0 0.0
        %571 = vmatpush1.xpose.msra.mxu0 0.0
        %572 = vmatprep.subr.mxu0 0.0
        %573 = vmatpush1.xpose.msra.mxu0 0.0
        %574 = vmatprep.subr.mxu0 0.0
        %575 = vmatpush1.xpose.msra.mxu0 0.0
        %576 = vmatprep.mubr.f32.mxu0 0.0
        %577 = vmatmul.mubr.f32.gmra.mrb[0].mxu0 %v508
        %v578 = vpop.f32.mrb[0].mxu0
        %v579 = vadd.f32 %v498, %v578
        %v580 = vpop.f32.mrb[0].mxu0
        %581 = vdwg.mxu0
        %583 = vrot.lane.b32.xlu0 %v490, 96
        %v584 = vpop.permute.xlu0 %583
        %v585 = vsel %vm411, %v490, 0
        %v587 = vsel %vm411, %v584, 0
        %589 = vmatprep.subr.mxu0 0.0
        %590 = vmatpush1.xpose.msra.mxu0 %v587
        %591 = vmatprep.subr.mxu0 0.0
        %592 = vmatpush1.xpose.msra.mxu0 0.0
        %593 = vmatprep.subr.mxu0 0.0
        %594 = vmatpush1.xpose.msra.mxu0 0.0
        %595 = vmatprep.subr.mxu0 0.0
        %596 = vmatpush1.xpose.msra.mxu0 0.0
        %597 = vmatprep.subr.mxu0 0.0
        %598 = vmatpush1.xpose.msra.mxu0 0.0
        %599 = vmatprep.subr.mxu0 0.0
        %600 = vmatpush1.xpose.msra.mxu0 0.0
        %601 = vmatprep.subr.mxu0 0.0
        %602 = vmatpush1.xpose.msra.mxu0 0.0
        %603 = vmatprep.subr.mxu0 0.0
        %604 = vmatpush1.xpose.msra.mxu0 0.0
        %605 = vmatprep.subr.mxu0 0.0
        %606 = vmatpush1.xpose.msra.mxu0 0.0
        %607 = vmatprep.subr.mxu0 0.0
        %608 = vmatpush1.xpose.msra.mxu0 0.0
        %609 = vmatprep.subr.mxu0 0.0
        %610 = vmatpush1.xpose.msra.mxu0 0.0
        %611 = vmatprep.subr.mxu0 0.0
        %612 = vmatpush1.xpose.msra.mxu0 0.0
        %613 = vmatprep.subr.mxu0 0.0
        %614 = vmatpush1.xpose.msra.mxu0 0.0
        %615 = vmatprep.subr.mxu0 0.0
        %616 = vmatpush1.xpose.msra.mxu0 0.0
        %617 = vmatprep.subr.mxu0 0.0
        %618 = vmatpush1.xpose.msra.mxu0 0.0
        %619 = vmatprep.subr.mxu0 0.0
        %620 = vmatpush1.xpose.msra.mxu0 0.0
        %621 = vmatprep.subr.mxu0 0.0
        %622 = vmatpush1.xpose.msra.mxu0 0.0
        %623 = vmatprep.subr.mxu0 0.0
        %624 = vmatpush1.xpose.msra.mxu0 0.0
        %625 = vmatprep.subr.mxu0 0.0
        %626 = vmatpush1.xpose.msra.mxu0 0.0
        %627 = vmatprep.subr.mxu0 0.0
        %628 = vmatpush1.xpose.msra.mxu0 0.0
        %629 = vmatprep.subr.mxu0 0.0
        %630 = vmatpush1.xpose.msra.mxu0 0.0
        %631 = vmatprep.subr.mxu0 0.0
        %632 = vmatpush1.xpose.msra.mxu0 0.0
        %633 = vmatprep.subr.mxu0 0.0
        %634 = vmatpush1.xpose.msra.mxu0 0.0
        %635 = vmatprep.subr.mxu0 0.0
        %636 = vmatpush1.xpose.msra.mxu0 0.0
        %637 = vmatprep.subr.mxu0 0.0
        %638 = vmatpush1.xpose.msra.mxu0 0.0
        %639 = vmatprep.subr.mxu0 0.0
        %640 = vmatpush1.xpose.msra.mxu0 0.0
        %641 = vmatprep.subr.mxu0 0.0
        %642 = vmatpush1.xpose.msra.mxu0 0.0
        %643 = vmatprep.subr.mxu0 0.0
        %644 = vmatpush1.xpose.msra.mxu0 0.0
        %645 = vmatprep.subr.mxu0 0.0
        %646 = vmatpush1.xpose.msra.mxu0 0.0
        %647 = vmatprep.subr.mxu0 0.0
        %648 = vmatpush1.xpose.msra.mxu0 0.0
        %649 = vmatprep.subr.mxu0 0.0
        %650 = vmatpush1.xpose.msra.mxu0 0.0
        %651 = vmatprep.subr.mxu0 0.0
        %652 = vmatpush1.xpose.msra.mxu0 0.0
        %653 = vmatprep.mubr.f32.mxu0 0.0
        %654 = vmatmul.mubr.f32.gmra.mrb[0].mxu0 %v585
        %v655 = vpop.f32.mrb[0].mxu0
        %v656 = vadd.f32 %v502, %v655
        %v657 = vpop.f32.mrb[0].mxu0
        %658 = vdwg.mxu0
        %vm659 = vcmask 64512
        %v660 = vsel %vm659, %v579, -inf
        %661 = vmax.xlane.f32.xlu0 %v660
        %v662 = vpop.xlane.xlu0 %661
        %v663 = vsel %vm659, %v656, -inf
        %664 = vmax.xlane.f32.xlu0 %v663
        %v665 = vpop.xlane.xlu0 %664
        %v666 = vsub.f32 %v579, %v662
        %v667 = vsub.f32 %v656, %v665
        %v668 = vmul.f32 %v666, 1.442695
        %v669 = vpow.pop %v668
        %v670 = vmul.f32 %v667, 1.442695
        %v671 = vpow.pop %v670
        %v672 = vsel %vm659, %v669, 0.0
        %673 = vadd.xlane.f32.xlu0 %v672
        %v674 = vpop.xlane.xlu0 %673
        %v675 = vsel %vm659, %v671, 0.0
        %676 = vadd.xlane.f32.xlu0 %v675
        %v677 = vpop.xlane.xlu0 %676
        %v678 = vrcp.pop %v674
        %v679 = vrcp.pop %v677
        %v680 = vmul.f32 %v669, %v678
        %v681 = vmul.f32 %v671, %v679
        %682 = vrot.lane.b32.xlu0 %v485, 64
        %v683 = vpop.permute.xlu0 %682
        %v686 = vsel %vm659, %v680, 0
        %688 = vmatprep.subr.mxu0 0.0
        %689 = vmatpush1.msra.mxu0 %v683
        %690 = vmatprep.subr.mxu0 0.0
        %691 = vmatpush1.msra.mxu0 0.0
        %692 = vmatprep.subr.mxu0 0.0
        %693 = vmatpush1.msra.mxu0 0.0
        %694 = vmatprep.subr.mxu0 0.0
        %695 = vmatpush1.msra.mxu0 0.0
        %696 = vmatprep.subr.mxu0 0.0
        %697 = vmatpush1.msra.mxu0 0.0
        %698 = vmatprep.subr.mxu0 0.0
        %699 = vmatpush1.msra.mxu0 0.0
        %700 = vmatprep.subr.mxu0 0.0
        %701 = vmatpush1.msra.mxu0 0.0
        %702 = vmatprep.subr.mxu0 0.0
        %703 = vmatpush1.msra.mxu0 0.0
        %704 = vmatprep.subr.mxu0 0.0
        %705 = vmatpush1.msra.mxu0 0.0
        %706 = vmatprep.subr.mxu0 0.0
        %707 = vmatpush1.msra.mxu0 0.0
        %708 = vmatprep.subr.mxu0 0.0
        %709 = vmatpush1.msra.mxu0 0.0
        %710 = vmatprep.subr.mxu0 0.0
        %711 = vmatpush1.msra.mxu0 0.0
        %712 = vmatprep.subr.mxu0 0.0
        %713 = vmatpush1.msra.mxu0 0.0
        %714 = vmatprep.subr.mxu0 0.0
        %715 = vmatpush1.msra.mxu0 0.0
        %716 = vmatprep.subr.mxu0 0.0
        %717 = vmatpush1.msra.mxu0 0.0
        %718 = vmatprep.subr.mxu0 0.0
        %719 = vmatpush1.msra.mxu0 0.0
        %720 = vmatprep.subr.mxu0 0.0
        %721 = vmatpush1.msra.mxu0 0.0
        %722 = vmatprep.subr.mxu0 0.0
        %723 = vmatpush1.msra.mxu0 0.0
        %724 = vmatprep.subr.mxu0 0.0
        %725 = vmatpush1.msra.mxu0 0.0
        %726 = vmatprep.subr.mxu0 0.0
        %727 = vmatpush1.msra.mxu0 0.0
        %728 = vmatprep.subr.mxu0 0.0
        %729 = vmatpush1.msra.mxu0 0.0
        %730 = vmatprep.subr.mxu0 0.0
        %731 = vmatpush1.msra.mxu0 0.0
        %732 = vmatprep.subr.mxu0 0.0
        %733 = vmatpush1.msra.mxu0 0.0
        %734 = vmatprep.subr.mxu0 0.0
        %735 = vmatpush1.msra.mxu0 0.0
        %736 = vmatprep.subr.mxu0 0.0
        %737 = vmatpush1.msra.mxu0 0.0
        %738 = vmatprep.subr.mxu0 0.0
        %739 = vmatpush1.msra.mxu0 0.0
        %740 = vmatprep.subr.mxu0 0.0
        %741 = vmatpush1.msra.mxu0 0.0
        %742 = vmatprep.subr.mxu0 0.0
        %743 = vmatpush1.msra.mxu0 0.0
        %744 = vmatprep.subr.mxu0 0.0
        %745 = vmatpush1.msra.mxu0 0.0
        %746 = vmatprep.subr.mxu0 0.0
        %747 = vmatpush1.msra.mxu0 0.0
        %748 = vmatprep.subr.mxu0 0.0
        %749 = vmatpush1.msra.mxu0 0.0
        %750 = vmatprep.subr.mxu0 0.0
        %751 = vmatpush1.msra.mxu0 0.0
        %752 = vmatprep.mubr.f32.mxu0 0.0
        %753 = vmatmul.mubr.f32.gmra.mrb[0].mxu0 %v686
        %v754 = vpop.f32.mrb[0].mxu0
        %v755 = vadd.f32 0.0, %v754
        %v756 = vpop.f32.mrb[0].mxu0
        %757 = vdwg.mxu0
        %758 = vrot.lane.b32.xlu0 %v490, 64
        %v759 = vpop.permute.xlu0 %758
        %v762 = vsel %vm659, %v681, 0
        %764 = vmatprep.subr.mxu0 0.0
        %765 = vmatpush1.msra.mxu0 %v759
        %766 = vmatprep.subr.mxu0 0.0
        %767 = vmatpush1.msra.mxu0 0.0
        %768 = vmatprep.subr.mxu0 0.0
        %769 = vmatpush1.msra.mxu0 0.0
        %770 = vmatprep.subr.mxu0 0.0
        %771 = vmatpush1.msra.mxu0 0.0
        %772 = vmatprep.subr.mxu0 0.0
        %773 = vmatpush1.msra.mxu0 0.0
        %774 = vmatprep.subr.mxu0 0.0
        %775 = vmatpush1.msra.mxu0 0.0
        %776 = vmatprep.subr.mxu0 0.0
        %777 = vmatpush1.msra.mxu0 0.0
        %778 = vmatprep.subr.mxu0 0.0
        %779 = vmatpush1.msra.mxu0 0.0
        %780 = vmatprep.subr.mxu0 0.0
        %781 = vmatpush1.msra.mxu0 0.0
        %782 = vmatprep.subr.mxu0 0.0
        %783 = vmatpush1.msra.mxu0 0.0
        %784 = vmatprep.subr.mxu0 0.0
        %785 = vmatpush1.msra.mxu0 0.0
        %786 = vmatprep.subr.mxu0 0.0
        %787 = vmatpush1.msra.mxu0 0.0
        %788 = vmatprep.subr.mxu0 0.0
        %789 = vmatpush1.msra.mxu0 0.0
        %790 = vmatprep.subr.mxu0 0.0
        %791 = vmatpush1.msra.mxu0 0.0
        %792 = vmatprep.subr.mxu0 0.0
        %793 = vmatpush1.msra.mxu0 0.0
        %794 = vmatprep.subr.mxu0 0.0
        %795 = vmatpush1.msra.mxu0 0.0
        %796 = vmatprep.subr.mxu0 0.0
        %797 = vmatpush1.msra.mxu0 0.0
        %798 = vmatprep.subr.mxu0 0.0
        %799 = vmatpush1.msra.mxu0 0.0
        %800 = vmatprep.subr.mxu0 0.0
        %801 = vmatpush1.msra.mxu0 0.0
        %802 = vmatprep.subr.mxu0 0.0
        %803 = vmatpush1.msra.mxu0 0.0
        %804 = vmatprep.subr.mxu0 0.0
        %805 = vmatpush1.msra.mxu0 0.0
        %806 = vmatprep.subr.mxu0 0.0
        %807 = vmatpush1.msra.mxu0 0.0
        %808 = vmatprep.subr.mxu0 0.0
        %809 = vmatpush1.msra.mxu0 0.0
        %810 = vmatprep.subr.mxu0 0.0
        %811 = vmatpush1.msra.mxu0 0.0
        %812 = vmatprep.subr.mxu0 0.0
        %813 = vmatpush1.msra.mxu0 0.0
        %814 = vmatprep.subr.mxu0 0.0
        %815 = vmatpush1.msra.mxu0 0.0
        %816 = vmatprep.subr.mxu0 0.0
        %817 = vmatpush1.msra.mxu0 0.0
        %818 = vmatprep.subr.mxu0 0.0
        %819 = vmatpush1.msra.mxu0 0.0
        %820 = vmatprep.subr.mxu0 0.0
        %821 = vmatpush1.msra.mxu0 0.0
        %822 = vmatprep.subr.mxu0 0.0
        %823 = vmatpush1.msra.mxu0 0.0
        %824 = vmatprep.subr.mxu0 0.0
        %825 = vmatpush1.msra.mxu0 0.0
        %826 = vmatprep.subr.mxu0 0.0
        %827 = vmatpush1.msra.mxu0 0.0
        %828 = vmatprep.mubr.f32.mxu0 0.0
        %829 = vmatmul.mubr.f32.gmra.mrb[0].mxu0 %v762
        %v830 = vpop.f32.mrb[0].mxu0
        %v831 = vadd.f32 0.0, %v830
        %v832 = vpop.f32.mrb[0].mxu0
        %833 = vdwg.mxu0
        %v834 = vld [vmem:[%s4] sm:$0xff]
        %v835 = vld [vmem:[%s4 + $0x8] sm:$0xff]
        %v836 = vld [vmem:[%s4 + $0x10] sm:$0xff]
        %v837 = vld [vmem:[%s4 + $0x18] sm:$0xff]
        %v838 = vlaneseq
        %v839 = vshrl.u32 %v838, 7
        %v840 = vsub.s32 0, %v839
        %v841 = vrot.slane %v390, %v840
        %v843 = vsel %vm411, %v755, 0
        %v846 = vsel %vm411, %v831, 0
        %848 = vmatprep.subr.mxu0 0.0
        %849 = vmatpush1.msra.mxu0 %v834
        %850 = vmatprep.subr.mxu0 0.0
        %851 = vmatpush1.msra.mxu0 %v835
        %852 = vmatprep.subr.mxu0 0.0
        %853 = vmatpush1.msra.mxu0 %v836
        %854 = vmatprep.subr.mxu0 0.0
        %855 = vmatpush1.msra.mxu0 %v837
        %856 = vmatprep.subr.mxu0 0.0
        %857 = vmatpush1.msra.mxu0 0.0
        %858 = vmatprep.subr.mxu0 0.0
        %859 = vmatpush1.msra.mxu0 0.0
        %860 = vmatprep.subr.mxu0 0.0
        %861 = vmatpush1.msra.mxu0 0.0
        %862 = vmatprep.subr.mxu0 0.0
        %863 = vmatpush1.msra.mxu0 0.0
        %864 = vmatprep.subr.mxu0 0.0
        %865 = vmatpush1.msra.mxu0 0.0
        %866 = vmatprep.subr.mxu0 0.0
        %867 = vmatpush1.msra.mxu0 0.0
        %868 = vmatprep.subr.mxu0 0.0
        %869 = vmatpush1.msra.mxu0 0.0
        %870 = vmatprep.subr.mxu0 0.0
        %871 = vmatpush1.msra.mxu0 0.0
        %872 = vmatprep.subr.mxu0 0.0
        %873 = vmatpush1.msra.mxu0 0.0
        %874 = vmatprep.subr.mxu0 0.0
        %875 = vmatpush1.msra.mxu0 0.0
        %876 = vmatprep.subr.mxu0 0.0
        %877 = vmatpush1.msra.mxu0 0.0
        %878 = vmatprep.subr.mxu0 0.0
        %879 = vmatpush1.msra.mxu0 0.0
        %880 = vmatprep.subr.mxu0 0.0
        %881 = vmatpush1.msra.mxu0 0.0
        %882 = vmatprep.subr.mxu0 0.0
        %883 = vmatpush1.msra.mxu0 0.0
        %884 = vmatprep.subr.mxu0 0.0
        %885 = vmatpush1.msra.mxu0 0.0
        %886 = vmatprep.subr.mxu0 0.0
        %887 = vmatpush1.msra.mxu0 0.0
        %888 = vmatprep.subr.mxu0 0.0
        %889 = vmatpush1.msra.mxu0 0.0
        %890 = vmatprep.subr.mxu0 0.0
        %891 = vmatpush1.msra.mxu0 0.0
        %892 = vmatprep.subr.mxu0 0.0
        %893 = vmatpush1.msra.mxu0 0.0
        %894 = vmatprep.subr.mxu0 0.0
        %895 = vmatpush1.msra.mxu0 0.0
        %896 = vmatprep.subr.mxu0 0.0
        %897 = vmatpush1.msra.mxu0 0.0
        %898 = vmatprep.subr.mxu0 0.0
        %899 = vmatpush1.msra.mxu0 0.0
        %900 = vmatprep.subr.mxu0 0.0
        %901 = vmatpush1.msra.mxu0 0.0
        %902 = vmatprep.subr.mxu0 0.0
        %903 = vmatpush1.msra.mxu0 0.0
        %904 = vmatprep.subr.mxu0 0.0
        %905 = vmatpush1.msra.mxu0 0.0
        %906 = vmatprep.subr.mxu0 0.0
        %907 = vmatpush1.msra.mxu0 0.0
        %908 = vmatprep.subr.mxu0 0.0
        %909 = vmatpush1.msra.mxu0 0.0
        %910 = vmatprep.subr.mxu0 0.0
        %911 = vmatpush1.msra.mxu0 0.0
        %912 = vmatprep.mubr.f32.mxu0 0.0
        %913 = vmatmul.mubr.f32.gmra.mrb[0].mxu0 %v843
        %v914 = vpop.f32.mrb[0].mxu0
        %v915 = vadd.f32 %v841, %v914
        %v916 = vpop.f32.mrb[0].mxu0
        %917 = vmatprep.mubr.f32.mxu0 0.0
        %918 = vmatmul.mubr.f32.gmra.mrb[0].mxu0 %v846
        %v919 = vpop.f32.mrb[0].mxu0
        %v920 = vadd.f32 %v841, %v919
        %v921 = vpop.f32.mrb[0].mxu0
        %922 = vdwg.mxu0
        %v923 = vadd.f32 %v386, %v915
        %v924 = vadd.f32 %v387, %v920
        %v925 = vsel %vm411, %v923, 0.0
        %926 = vadd.xlane.f32.xlu0 %v925
        %v927 = vpop.xlane.xlu0 %926
        %v928 = vsel %vm411, %v924, 0.0
        %929 = vadd.xlane.f32.xlu0 %v928
        %v930 = vpop.xlane.xlu0 %929
        %v931 = vrcp.pop 32.0
        %v932 = vmul.f32 %v927, %v931
        %v933 = vmul.f32 %v930, %v931
        %v934 = vsub.f32 %v923, %v932
        %v935 = vsub.f32 %v924, %v933
        %v936 = vmul.f32 %v934, %v934
        %v937 = vmul.f32 %v935, %v935
        %v938 = vsel %vm411, %v936, 0.0
        %939 = vadd.xlane.f32.xlu0 %v938
        %v940 = vpop.xlane.xlu0 %939
        %v941 = vsel %vm411, %v937, 0.0
        %942 = vadd.xlane.f32.xlu0 %v941
        %v943 = vpop.xlane.xlu0 %942
        %v944 = vmul.f32 %v940, %v931
        %v945 = vmul.f32 %v943, %v931
        %v946 = vadd.f32 %v944, 1e-12
        %v947 = vadd.f32 %v945, 1e-12
        %v948 = vrsqrt.pop %v946
        %v949 = vrsqrt.pop %v947
        %v950 = vmul.f32 %v934, %v948
        %v951 = vmul.f32 %v935, %v949
        %v952 = vlaneseq
        %v953 = vshrl.u32 %v952, 7
        %v954 = vsub.s32 0, %v953
        %v955 = vrot.slane %v391, %v954
        %v956 = vmul.f32 %v950, %v955
        %v957 = vmul.f32 %v951, %v955
        %v958 = vlaneseq
        %v959 = vshrl.u32 %v958, 7
        %v960 = vsub.s32 0, %v959
        %v961 = vrot.slane %v392, %v960
        %v962 = vadd.f32 %v956, %v961
        %v963 = vadd.f32 %v957, %v961
        %v964 = vld [vmem:[#allocation5] sm:$0xff]
        %v965 = vld [vmem:[#allocation5 + $0x8] sm:$0xff]
        %v966 = vld [vmem:[#allocation5 + $0x10] sm:$0xff]
        %v967 = vld [vmem:[#allocation5 + $0x18] sm:$0xff]
        %v968 = vld [vmem:[%s6] sm:$0x1]
        %v970 = vlaneseq
        %v971 = vshrl.u32 %v970, 7
        %v972 = vsub.s32 0, %v971
        %v973 = vrot.slane %v968, %v972
        %v976 = vsel %vm411, %v962, 0
        %v979 = vsel %vm411, %v963, 0
        %981 = vmatprep.subr.mxu0 0.0
        %982 = vmatpush1.msra.mxu0 %v964
        %983 = vmatprep.subr.mxu0 0.0
        %984 = vmatpush1.msra.mxu0 %v965
        %985 = vmatprep.subr.mxu0 0.0
        %986 = vmatpush1.msra.mxu0 %v966
        %987 = vmatprep.subr.mxu0 0.0
        %988 = vmatpush1.msra.mxu0 %v967
        %989 = vmatprep.subr.mxu0 0.0
        %990 = vmatpush1.msra.mxu0 0.0
        %991 = vmatprep.subr.mxu0 0.0
        %992 = vmatpush1.msra.mxu0 0.0
        %993 = vmatprep.subr.mxu0 0.0
        %994 = vmatpush1.msra.mxu0 0.0
        %995 = vmatprep.subr.mxu0 0.0
        %996 = vmatpush1.msra.mxu0 0.0
        %997 = vmatprep.subr.mxu0 0.0
        %998 = vmatpush1.msra.mxu0 0.0
        %999 = vmatprep.subr.mxu0 0.0
        %1000 = vmatpush1.msra.mxu0 0.0
        %1001 = vmatprep.subr.mxu0 0.0
        %1002 = vmatpush1.msra.mxu0 0.0
        %1003 = vmatprep.subr.mxu0 0.0
        %1004 = vmatpush1.msra.mxu0 0.0
        %1005 = vmatprep.subr.mxu0 0.0
        %1006 = vmatpush1.msra.mxu0 0.0
        %1007 = vmatprep.subr.mxu0 0.0
        %1008 = vmatpush1.msra.mxu0 0.0
        %1009 = vmatprep.subr.mxu0 0.0
        %1010 = vmatpush1.msra.mxu0 0.0
        %1011 = vmatprep.subr.mxu0 0.0
        %1012 = vmatpush1.msra.mxu0 0.0
        %1013 = vmatprep.subr.mxu0 0.0
        %1014 = vmatpush1.msra.mxu0 0.0
        %1015 = vmatprep.subr.mxu0 0.0
        %1016 = vmatpush1.msra.mxu0 0.0
        %1017 = vmatprep.subr.mxu0 0.0
        %1018 = vmatpush1.msra.mxu0 0.0
        %1019 = vmatprep.subr.mxu0 0.0
        %1020 = vmatpush1.msra.mxu0 0.0
        %1021 = vmatprep.subr.mxu0 0.0
        %1022 = vmatpush1.msra.mxu0 0.0
        %1023 = vmatprep.subr.mxu0 0.0
        %1024 = vmatpush1.msra.mxu0 0.0
        %1025 = vmatprep.subr.mxu0 0.0
        %1026 = vmatpush1.msra.mxu0 0.0
        %1027 = vmatprep.subr.mxu0 0.0
        %1028 = vmatpush1.msra.mxu0 0.0
        %1029 = vmatprep.subr.mxu0 0.0
        %1030 = vmatpush1.msra.mxu0 0.0
        %1031 = vmatprep.subr.mxu0 0.0
        %1032 = vmatpush1.msra.mxu0 0.0
        %1033 = vmatprep.subr.mxu0 0.0
        %1034 = vmatpush1.msra.mxu0 0.0
        %1035 = vmatprep.subr.mxu0 0.0
        %1036 = vmatpush1.msra.mxu0 0.0
        %1037 = vmatprep.subr.mxu0 0.0
        %1038 = vmatpush1.msra.mxu0 0.0
        %1039 = vmatprep.subr.mxu0 0.0
        %1040 = vmatpush1.msra.mxu0 0.0
        %1041 = vmatprep.subr.mxu0 0.0
        %1042 = vmatpush1.msra.mxu0 0.0
        %1043 = vmatprep.subr.mxu0 0.0
        %1044 = vmatpush1.msra.mxu0 0.0
        %1045 = vmatprep.mubr.f32.mxu0 0.0
        %1046 = vmatmul.mubr.f32.gmra.mrb[0].mxu0 %v976
        %v1047 = vpop.f32.mrb[0].mxu0
        %v1048 = vadd.f32 %v973, %v1047
        %v1049 = vpop.f32.mrb[0].mxu0
        %1050 = vmatprep.mubr.f32.mxu0 0.0
        %1051 = vmatmul.mubr.f32.gmra.mrb[0].mxu0 %v979
        %v1052 = vpop.f32.mrb[0].mxu0
        %v1053 = vadd.f32 %v973, %v1052
        %v1054 = vpop.f32.mrb[0].mxu0
        %1055 = vdwg.mxu0
        %v1056 = vmul.f32 %v1048, 0.5
        %v1057 = vmul.f32 %v1053, 0.5
        %v1058 = vmul.f32 %v1048, 0.044715
        %v1059 = vmul.f32 %v1053, 0.044715
        %v1060 = vmul.f32 %v1058, %v1048
        %v1061 = vmul.f32 %v1059, %v1053
        %v1062 = vmul.f32 %v1060, %v1048
        %v1063 = vmul.f32 %v1061, %v1053
        %v1064 = vadd.f32 %v1048, %v1062
        %v1065 = vadd.f32 %v1053, %v1063
        %v1066 = vmul.f32 %v1064, 0.7978846
        %v1067 = vmul.f32 %v1065, 0.7978846
        %v1068 = vtanh.pop %v1066
        %v1069 = vtanh.pop %v1067
        %v1070 = vadd.f32 %v1068, 1.0
        %v1071 = vadd.f32 %v1069, 1.0
        %v1072 = vmul.f32 %v1056, %v1070
        %v1073 = vmul.f32 %v1057, %v1071
        %v1074 = vld [vmem:[%s7] sm:$0xff]
        %v1075 = vld [vmem:[%s7 + $0x8] sm:$0xff]
        %v1076 = vld [vmem:[%s7 + $0x10] sm:$0xff]
        %v1077 = vld [vmem:[%s7 + $0x18] sm:$0xff]
        %v1078 = vld [vmem:[%s7 + $0x20] sm:$0xff]
        %v1079 = vld [vmem:[%s7 + $0x28] sm:$0xff]
        %v1080 = vld [vmem:[%s7 + $0x30] sm:$0xff]
        %v1081 = vld [vmem:[%s7 + $0x38] sm:$0xff]
        %v1082 = vlaneseq
        %v1083 = vshrl.u32 %v1082, 7
        %v1084 = vsub.s32 0, %v1083
        %v1085 = vrot.slane %v393, %v1084
        %vm1086 = vcmask 523264
        %v1088 = vsel %vm1086, %v1072, 0
        %v1091 = vsel %vm1086, %v1073, 0
        %1093 = vmatprep.subr.mxu0 0.0
        %1094 = vmatpush1.msra.mxu0 %v1074
        %1095 = vmatprep.subr.mxu0 0.0
        %1096 = vmatpush1.msra.mxu0 %v1075
        %1097 = vmatprep.subr.mxu0 0.0
        %1098 = vmatpush1.msra.mxu0 %v1076
        %1099 = vmatprep.subr.mxu0 0.0
        %1100 = vmatpush1.msra.mxu0 %v1077
        %1101 = vmatprep.subr.mxu0 0.0
        %1102 = vmatpush1.msra.mxu0 %v1078
        %1103 = vmatprep.subr.mxu0 0.0
        %1104 = vmatpush1.msra.mxu0 %v1079
        %1105 = vmatprep.subr.mxu0 0.0
        %1106 = vmatpush1.msra.mxu0 %v1080
        %1107 = vmatprep.subr.mxu0 0.0
        %1108 = vmatpush1.msra.mxu0 %v1081
        %1109 = vmatprep.subr.mxu0 0.0
        %1110 = vmatpush1.msra.mxu0 0.0
        %1111 = vmatprep.subr.mxu0 0.0
        %1112 = vmatpush1.msra.mxu0 0.0
        %1113 = vmatprep.subr.mxu0 0.0
        %1114 = vmatpush1.msra.mxu0 0.0
        %1115 = vmatprep.subr.mxu0 0.0
        %1116 = vmatpush1.msra.mxu0 0.0
        %1117 = vmatprep.subr.mxu0 0.0
        %1118 = vmatpush1.msra.mxu0 0.0
        %1119 = vmatprep.subr.mxu0 0.0
        %1120 = vmatpush1.msra.mxu0 0.0
        %1121 = vmatprep.subr.mxu0 0.0
        %1122 = vmatpush1.msra.mxu0 0.0
        %1123 = vmatprep.subr.mxu0 0.0
        %1124 = vmatpush1.msra.mxu0 0.0
        %1125 = vmatprep.subr.mxu0 0.0
        %1126 = vmatpush1.msra.mxu0 0.0
        %1127 = vmatprep.subr.mxu0 0.0
        %1128 = vmatpush1.msra.mxu0 0.0
        %1129 = vmatprep.subr.mxu0 0.0
        %1130 = vmatpush1.msra.mxu0 0.0
        %1131 = vmatprep.subr.mxu0 0.0
        %1132 = vmatpush1.msra.mxu0 0.0
        %1133 = vmatprep.subr.mxu0 0.0
        %1134 = vmatpush1.msra.mxu0 0.0
        %1135 = vmatprep.subr.mxu0 0.0
        %1136 = vmatpush1.msra.mxu0 0.0
        %1137 = vmatprep.subr.mxu0 0.0
        %1138 = vmatpush1.msra.mxu0 0.0
        %1139 = vmatprep.subr.mxu0 0.0
        %1140 = vmatpush1.msra.mxu0 0.0
        %1141 = vmatprep.subr.mxu0 0.0
        %1142 = vmatpush1.msra.mxu0 0.0
        %1143 = vmatprep.subr.mxu0 0.0
        %1144 = vmatpush1.msra.mxu0 0.0
        %1145 = vmatprep.subr.mxu0 0.0
        %1146 = vmatpush1.msra.mxu0 0.0
        %1147 = vmatprep.subr.mxu0 0.0
        %1148 = vmatpush1.msra.mxu0 0.0
        %1149 = vmatprep.subr.mxu0 0.0
        %1150 = vmatpush1.msra.mxu0 0.0
        %1151 = vmatprep.subr.mxu0 0.0
        %1152 = vmatpush1.msra.mxu0 0.0
        %1153 = vmatprep.subr.mxu0 0.0
        %1154 = vmatpush1.msra.mxu0 0.0
        %1155 = vmatprep.subr.mxu0 0.0
        %1156 = vmatpush1.msra.mxu0 0.0
        %1157 = vmatprep.mubr.f32.mxu0 0.0
        %1158 = vmatmul.mubr.f32.gmra.mrb[0].mxu0 %v1088
        %v1159 = vpop.f32.mrb[0].mxu0
        %v1160 = vadd.f32 %v1085, %v1159
        %v1161 = vpop.f32.mrb[0].mxu0
        %1162 = vmatprep.mubr.f32.mxu0 0.0
        %1163 = vmatmul.mubr.f32.gmra.mrb[0].mxu0 %v1091
        %v1164 = vpop.f32.mrb[0].mxu0
        %v1165 = vadd.f32 %v1085, %v1164
        %v1166 = vpop.f32.mrb[0].mxu0
        %1167 = vdwg.mxu0
        %v1168 = vadd.f32 %v962, %v1160
        %v1169 = vadd.f32 %v963, %v1165
        %v1170 = vsel %vm411, %v1168, 0.0
        %1171 = vadd.xlane.f32.xlu0 %v1170
        %v1172 = vpop.xlane.xlu0 %1171
        %v1173 = vsel %vm411, %v1169, 0.0
        %1174 = vadd.xlane.f32.xlu0 %v1173
        %v1175 = vpop.xlane.xlu0 %1174
        %v1176 = vmul.f32 %v1172, %v931
        %v1177 = vmul.f32 %v1175, %v931
        %v1178 = vsub.f32 %v1168, %v1176
        %v1179 = vsub.f32 %v1169, %v1177
        %v1180 = vmul.f32 %v1178, %v1178
        %v1181 = vmul.f32 %v1179, %v1179
        %v1182 = vsel %vm411, %v1180, 0.0
        %1183 = vadd.xlane.f32.xlu0 %v1182
        %v1184 = vpop.xlane.xlu0 %1183
        %v1185 = vsel %vm411, %v1181, 0.0
        %1186 = vadd.xlane.f32.xlu0 %v1185
        %v1187 = vpop.xlane.xlu0 %1186
        %v1188 = vmul.f32 %v1184, %v931
        %v1189 = vmul.f32 %v1187, %v931
        %v1190 = vadd.f32 %v1188, 1e-12
        %v1191 = vadd.f32 %v1189, 1e-12
        %v1192 = vrsqrt.pop %v1190
        %v1193 = vrsqrt.pop %v1191
        %v1194 = vmul.f32 %v1178, %v1192
        %v1195 = vmul.f32 %v1179, %v1193
        %v1196 = vlaneseq
        %v1197 = vshrl.u32 %v1196, 7
        %v1198 = vsub.s32 0, %v1197
        %v1199 = vrot.slane %v394, %v1198
        %v1200 = vmul.f32 %v1194, %v1199
        %v1201 = vmul.f32 %v1195, %v1199
        %v1202 = vlaneseq
        %v1203 = vshrl.u32 %v1202, 7
        %v1204 = vsub.s32 0, %v1203
        %v1205 = vrot.slane %v395, %v1204
        %v1206 = vadd.f32 %v1200, %v1205
        %v1207 = vadd.f32 %v1201, %v1205
        %v1209 = vsel %vm659, %v388, 0
        %1211 = vmatprep.subr.mxu0 0.0
        %1212 = vmatpush1.msra.mxu0 %v1206
        %1213 = vmatprep.subr.mxu0 0.0
        %1214 = vmatpush1.msra.mxu0 0.0
        %1215 = vmatprep.subr.mxu0 0.0
        %1216 = vmatpush1.msra.mxu0 0.0
        %1217 = vmatprep.subr.mxu0 0.0
        %1218 = vmatpush1.msra.mxu0 0.0
        %1219 = vmatprep.subr.mxu0 0.0
        %1220 = vmatpush1.msra.mxu0 0.0
        %1221 = vmatprep.subr.mxu0 0.0
        %1222 = vmatpush1.msra.mxu0 0.0
        %1223 = vmatprep.subr.mxu0 0.0
        %1224 = vmatpush1.msra.mxu0 0.0
        %1225 = vmatprep.subr.mxu0 0.0
        %1226 = vmatpush1.msra.mxu0 0.0
        %1227 = vmatprep.subr.mxu0 0.0
        %1228 = vmatpush1.msra.mxu0 0.0
        %1229 = vmatprep.subr.mxu0 0.0
        %1230 = vmatpush1.msra.mxu0 0.0
        %1231 = vmatprep.subr.mxu0 0.0
        %1232 = vmatpush1.msra.mxu0 0.0
        %1233 = vmatprep.subr.mxu0 0.0
        %1234 = vmatpush1.msra.mxu0 0.0
        %1235 = vmatprep.subr.mxu0 0.0
        %1236 = vmatpush1.msra.mxu0 0.0
        %1237 = vmatprep.subr.mxu0 0.0
        %1238 = vmatpush1.msra.mxu0 0.0
        %1239 = vmatprep.subr.mxu0 0.0
        %1240 = vmatpush1.msra.mxu0 0.0
        %1241 = vmatprep.subr.mxu0 0.0
        %1242 = vmatpush1.msra.mxu0 0.0
        %1243 = vmatprep.subr.mxu0 0.0
        %1244 = vmatpush1.msra.mxu0 0.0
        %1245 = vmatprep.subr.mxu0 0.0
        %1246 = vmatpush1.msra.mxu0 0.0
        %1247 = vmatprep.subr.mxu0 0.0
        %1248 = vmatpush1.msra.mxu0 0.0
        %1249 = vmatprep.subr.mxu0 0.0
        %1250 = vmatpush1.msra.mxu0 0.0
        %1251 = vmatprep.subr.mxu0 0.0
        %1252 = vmatpush1.msra.mxu0 0.0
        %1253 = vmatprep.subr.mxu0 0.0
        %1254 = vmatpush1.msra.mxu0 0.0
        %1255 = vmatprep.subr.mxu0 0.0
        %1256 = vmatpush1.msra.mxu0 0.0
        %1257 = vmatprep.subr.mxu0 0.0
        %1258 = vmatpush1.msra.mxu0 0.0
        %1259 = vmatprep.subr.mxu0 0.0
        %1260 = vmatpush1.msra.mxu0 0.0
        %1261 = vmatprep.subr.mxu0 0.0
        %1262 = vmatpush1.msra.mxu0 0.0
        %1263 = vmatprep.subr.mxu0 0.0
        %1264 = vmatpush1.msra.mxu0 0.0
        %1265 = vmatprep.subr.mxu0 0.0
        %1266 = vmatpush1.msra.mxu0 0.0
        %1267 = vmatprep.subr.mxu0 0.0
        %1268 = vmatpush1.msra.mxu0 0.0
        %1269 = vmatprep.subr.mxu0 0.0
        %1270 = vmatpush1.msra.mxu0 0.0
        %1271 = vmatprep.subr.mxu0 0.0
        %1272 = vmatpush1.msra.mxu0 0.0
        %1273 = vmatprep.subr.mxu0 0.0
        %1274 = vmatpush1.msra.mxu0 0.0
        %1275 = vmatprep.mubr.f32.mxu0 0.0
        %1276 = vmatmul.mubr.f32.gmra.mrb[0].mxu0 %v1209
        %v1277 = vpop.f32.mrb[0].mxu0
        %v1278 = vadd.f32 0.0, %v1277
        %v1279 = vpop.f32.mrb[0].mxu0
        %1280 = vdwg.mxu0
        %v1282 = vsel %vm659, %v389, 0
        %1284 = vmatprep.subr.mxu0 0.0
        %1285 = vmatpush1.msra.mxu0 %v1207
        %1286 = vmatprep.subr.mxu0 0.0
        %1287 = vmatpush1.msra.mxu0 0.0
        %1288 = vmatprep.subr.mxu0 0.0
        %1289 = vmatpush1.msra.mxu0 0.0
        %1290 = vmatprep.subr.mxu0 0.0
        %1291 = vmatpush1.msra.mxu0 0.0
        %1292 = vmatprep.subr.mxu0 0.0
        %1293 = vmatpush1.msra.mxu0 0.0
        %1294 = vmatprep.subr.mxu0 0.0
        %1295 = vmatpush1.msra.mxu0 0.0
        %1296 = vmatprep.subr.mxu0 0.0
        %1297 = vmatpush1.msra.mxu0 0.0
        %1298 = vmatprep.subr.mxu0 0.0
        %1299 = vmatpush1.msra.mxu0 0.0
        %1300 = vmatprep.subr.mxu0 0.0
        %1301 = vmatpush1.msra.mxu0 0.0
        %1302 = vmatprep.subr.mxu0 0.0
        %1303 = vmatpush1.msra.mxu0 0.0
        %1304 = vmatprep.subr.mxu0 0.0
        %1305 = vmatpush1.msra.mxu0 0.0
        %1306 = vmatprep.subr.mxu0 0.0
        %1307 = vmatpush1.msra.mxu0 0.0
        %1308 = vmatprep.subr.mxu0 0.0
        %1309 = vmatpush1.msra.mxu0 0.0
        %1310 = vmatprep.subr.mxu0 0.0
        %1311 = vmatpush1.msra.mxu0 0.0
        %1312 = vmatprep.subr.mxu0 0.0
        %1313 = vmatpush1.msra.mxu0 0.0
        %1314 = vmatprep.subr.mxu0 0.0
        %1315 = vmatpush1.msra.mxu0 0.0
        %1316 = vmatprep.subr.mxu0 0.0
        %1317 = vmatpush1.msra.mxu0 0.0
        %1318 = vmatprep.subr.mxu0 0.0
        %1319 = vmatpush1.msra.mxu0 0.0
        %1320 = vmatprep.subr.mxu0 0.0
        %1321 = vmatpush1.msra.mxu0 0.0
        %1322 = vmatprep.subr.mxu0 0.0
        %1323 = vmatpush1.msra.mxu0 0.0
        %1324 = vmatprep.subr.mxu0 0.0
        %1325 = vmatpush1.msra.mxu0 0.0
        %1326 = vmatprep.subr.mxu0 0.0
        %1327 = vmatpush1.msra.mxu0 0.0
        %1328 = vmatprep.subr.mxu0 0.0
        %1329 = vmatpush1.msra.mxu0 0.0
        %1330 = vmatprep.subr.mxu0 0.0
        %1331 = vmatpush1.msra.mxu0 0.0
        %1332 = vmatprep.subr.mxu0 0.0
        %1333 = vmatpush1.msra.mxu0 0.0
        %1334 = vmatprep.subr.mxu0 0.0
        %1335 = vmatpush1.msra.mxu0 0.0
        %1336 = vmatprep.subr.mxu0 0.0
        %1337 = vmatpush1.msra.mxu0 0.0
        %1338 = vmatprep.subr.mxu0 0.0
        %1339 = vmatpush1.msra.mxu0 0.0
        %1340 = vmatprep.subr.mxu0 0.0
        %1341 = vmatpush1.msra.mxu0 0.0
        %1342 = vmatprep.subr.mxu0 0.0
        %1343 = vmatpush1.msra.mxu0 0.0
        %1344 = vmatprep.subr.mxu0 0.0
        %1345 = vmatpush1.msra.mxu0 0.0
        %1346 = vmatprep.subr.mxu0 0.0
        %1347 = vmatpush1.msra.mxu0 0.0
        %1348 = vmatprep.mubr.f32.mxu0 0.0
        %1349 = vmatmul.mubr.f32.gmra.mrb[0].mxu0 %v1282
        %v1350 = vpop.f32.mrb[0].mxu0
        %v1351 = vadd.f32 0.0, %v1350
        %v1352 = vpop.f32.mrb[0].mxu0
        %1353 = vdwg.mxu0
        %vm1354 = vcmask 57344
        %v1355 = vsel %vm1354, %v388, 0.0
        %1356 = vadd.xlane.f32.xlu0 %v1355
        %v1357 = vpop.xlane.xlu0 %1356
        %v1358 = vsel %vm1354, %v389, 0.0
        %1359 = vadd.xlane.f32.xlu0 %v1358
        %v1360 = vpop.xlane.xlu0 %1359
        %v1361 = vmax.f32 %v1357, 1e-09
        %v1362 = vmax.f32 %v1360, 1e-09
        %v1363 = vrcp.pop %v1361
        %v1364 = vrcp.pop %v1362
        %v1365 = vmul.f32 %v1278, %v1363
        %v1366 = vmul.f32 %v1351, %v1364
        %v1369 = vrot.slane %v1366, 7
        %vm1370 = vcmask 1041409
        %v1371 = vsel %vm1370, %v1369, %v1365
        %vm1373 = vcmask 254976
        %1374 = vst.msk [vmem:[%s380] sm:$0x3] %vm1373, %v1371
        %s1375 = sand.u32 %s234, 1
        %s1376 = scalar_lea.sflag [#allocation4], %s1375
        %s1377 = sand.u32 %s234, 1
        %s1378 = smul.addr %s1377, 2
        %s1379 = scalar_lea.vmem [#allocation7], %s1378
        // Predicated region
        $region65: #{tpu_custom_call.1} parent=55 // pred_check
          %p1380 = pneg %p244
        $region66: #{tpu_custom_call.1} parent=55 // pred_check_branch
          %1382 = sbr.rel (%p1380) target = $region68
        $region67: #{tpu_custom_call.1} parent=55 // pred_region
          %s1384 = ssub.s32 32, 32
          %1385 = vsyncadd %s1376, %s1384
          %s1386 = smul.addr %s27, 32
          %s1387 = scalar_lea.hbm %s9, %s1386
          %s1389 = sshll.u32 %s1379, 4
          %s1390 = int_to_ptr.vmem [resolvable:$true] %s1389
          %1392 = dma.vmem_to_hbm [thread:$0]  %s1390, 32, %s1387, %s1376
        $region68: #{tpu_custom_call.1} parent=55 // pred_fallthru
          _
      $region56: #{tpu_custom_call.1} parent=5 // pred_fallthru
        _
      %p1393 = scmp.le.s32.totalorder 2, %s22
      // Predicated region
      $region69: #{tpu_custom_call.1} parent=5 // pred_check
        %p1394 = pneg %p1393
      $region70: #{tpu_custom_call.1} parent=5 // pred_check_branch
        %1396 = sbr.rel (%p1394) target = $region72
      $region71: #{tpu_custom_call.1} parent=5 // pred_region
        %s1397 = ssub.s32 %s22, 2
        // Predicated region
        $region73: #{tpu_custom_call.1} parent=71 // pred_check
          %p1398 = pneg %p250
        $region74: #{tpu_custom_call.1} parent=71 // pred_check_branch
          %1400 = sbr.rel (%p1398) target = $region76
        $region75: #{tpu_custom_call.1} parent=71 // pred_region
          %s1401 = sand.u32 %s235, 1
          %s1402 = scalar_lea.sflag [#allocation4], %s1401
          %s1403 = sand.u32 %s235, 1
          %s1404 = smul.addr %s1403, 2
          %s1405 = scalar_lea.vmem [#allocation7], %s1404
          %1406 = dma.done %s1402, 32
        $region76: #{tpu_custom_call.1} parent=71 // pred_fallthru
          _
      $region72: #{tpu_custom_call.1} parent=5 // pred_fallthru
        _
    $region6: #{tpu_custom_call.1} parent=1 // loop_footer
      %s26 = sadd.s32 1, %s22
    $region7: #{tpu_custom_call.1} parent=1 // loop_footer_branch
      %21 = sbr.rel target = $region3
    $region8: #{tpu_custom_call.1} parent=1 // loop_exit
      _
    %1407 = vsyncpa [#allocation3], 1
    %s1408 = scalar_lea.sflag [#allocation3], 1
    %1409 = vsyncpa %s1408, 1
    %1410 = vsyncpa [#allocation6], 1
    %1411 = vsyncpa [#allocation4], 1
    %s1412 = scalar_lea.sflag [#allocation4], 1
    %1413 = vsyncpa %s1412, 1

</llo_original>
